<compile_context>
chip_gen: v5e
topology: v5e:2x2
jax: 0.10.0
libtpu: 0.0.40
codegen_flags: <defaults>
</compile_context>

<pallas_src>
import math
import jax
import jax.numpy as jnp
from jax.experimental import pallas as pl
from jax.experimental.pallas import tpu as pltpu


# ----------------------------------------------------------------------------
# Kernels
# ----------------------------------------------------------------------------
def mlp_kernel_resident(x_ref, w1_ref, b1_ref, w2_ref, b2_ref, o_ref):
    """Whole hidden dim in one step; weights resident in VMEM (constant index)."""
    # x_ref: (tm, C) bf16; w1_ref: (C, H) bf16; b1_ref: (1, H) f32
    # w2_ref: (H, C) bf16; b2_ref: (1, C) f32; o_ref: (tm, C)
    h = jnp.dot(x_ref[...], w1_ref[...], preferred_element_type=jnp.float32)
    h = h + b1_ref[...]

    # Exact GELU (nn.GELU default) in f32: 0.5 * x * (1 + erf(x / sqrt(2))).
    inv_sqrt2 = jnp.float32(1.0 / math.sqrt(2.0))
    h = 0.5 * h * (1.0 + jax.lax.erf(h * inv_sqrt2))

    y = jnp.dot(h.astype(w2_ref.dtype), w2_ref[...],
                preferred_element_type=jnp.float32)
    # dropout(p=0.0) / eval mode -> identity
    o_ref[...] = (y + b2_ref[...]).astype(o_ref.dtype)


def mlp_kernel_streamed(x_ref, w1_ref, b1_ref, w2_ref, b2_ref, o_ref, acc_ref):
    """H-tiled reduction with f32 VMEM accumulator (for weights > VMEM budget)."""
    k = pl.program_id(1)

    @pl.when(k == 0)
    def _():
        # Fold the c_proj bias into the accumulator init.
        acc_ref[...] = jnp.broadcast_to(b2_ref[...], acc_ref.shape)

    # c_fc on this H-slab: (tm, C) @ (C, th) -> (tm, th), f32 MXU accumulation.
    h = jnp.dot(x_ref[...], w1_ref[...], preferred_element_type=jnp.float32)
    h = h + b1_ref[...]

    inv_sqrt2 = jnp.float32(1.0 / math.sqrt(2.0))
    h = 0.5 * h * (1.0 + jax.lax.erf(h * inv_sqrt2))

    # c_proj contribution of this slab: (tm, th) @ (th, C) accumulated in f32.
    acc_ref[...] += jnp.dot(
        h.astype(w2_ref.dtype), w2_ref[...], preferred_element_type=jnp.float32
    )

    @pl.when(k == pl.num_programs(1) - 1)
    def _():
        # dropout(p=0.0) / eval mode -> identity
        o_ref[...] = acc_ref[...].astype(o_ref.dtype)


# ----------------------------------------------------------------------------
# Tile / VMEM budgeting
# ----------------------------------------------------------------------------
def _round_up(x, m):
    return ((x + m - 1) // m) * m


def _device_vmem_capacity_bytes():
    """Physical VMEM per TensorCore; conservative fallback if query fails."""
    try:
        return int(pltpu.get_tpu_info().vmem_capacity_bytes)
    except Exception:
        return 64 * 1024 * 1024  # v7x floor: safe on every generation


def _vmem_resident_bytes(tm, C, H, in_b, out_b):
    # Double-buffered x/out tiles + resident (double-buffered) weights/biases
    # + the live f32 intermediate and its bf16 cast.
    w = 2 * (C * H + H * C) * in_b + 2 * (H + C) * 4
    xo = 2 * tm * C * in_b + 2 * tm * C * out_b
    inter = tm * H * (4 + in_b)
    return w + xo + inter


def _vmem_streamed_bytes(tm, th, C, in_b, out_b):
    w = 2 * (C * th + th * C) * in_b + 2 * th * 4 + 2 * C * 4
    xo = 2 * tm * C * in_b + 2 * tm * C * out_b
    acc = tm * C * 4
    inter = tm * th * (4 + in_b)
    return w + xo + acc + inter


def _th_candidates(H):
    """Multiple-of-128 divisors of H, largest first (prefer deep contraction)."""
    cands = [d for d in range(128, H + 1, 128) if H % d == 0]
    cands.sort(reverse=True)
    return cands if cands else [H]


def _select_tiles(M, C, H, in_b, out_b, budget):
    """Return (mode, tm, th, m_pad)."""
    if M < 128:
        tm_cands = [_round_up(M, 16)]  # no 8x padded-row waste for decode shapes
    else:
        cap = _round_up(M, 128)
        tm_cands = [t for t in (1024, 512, 256, 128) if t <= cap] or [128]

    # Resident fast path: whole-H weights live in VMEM, biggest tm that fits.
    for tm in tm_cands:
        if _vmem_resident_bytes(tm, C, H, in_b, out_b) <= budget:
            return "resident", tm, H, _round_up(M, tm)

    # Streamed fallback: largest H slab (>=256 contraction depth when possible).
    for tm in tm_cands:
        for th in _th_candidates(H):
            if _vmem_streamed_bytes(tm, th, C, in_b, out_b) <= budget:
                return "streamed", tm, th, _round_up(M, tm)

    # Last resort: smallest tiles, let the compiler sort it out.
    tm = tm_cands[-1]
    th = _th_candidates(H)[-1]
    return "streamed", tm, th, _round_up(M, tm)


# ----------------------------------------------------------------------------
# Wrapper
# ----------------------------------------------------------------------------
def mlp_pallas(x, w1_t, b1, w2_t, b2, *, compute_dtype=jnp.bfloat16):
    """x: (B, T, C).  w1_t: (C, H), b1: (H,), w2_t: (H, C), b2: (C,)."""
    B, T, C = x.shape
    H = w1_t.shape[1]
    M = B * T
    out_dtype = x.dtype

    in_b = jnp.dtype(compute_dtype).itemsize
    out_b = jnp.dtype(out_dtype).itemsize

    vmem_cap = _device_vmem_capacity_bytes()
    budget = int(vmem_cap * 0.75)  # leave headroom for internal scratch

    mode, tm, th, m_pad = _select_tiles(M, C, H, in_b, out_b, budget)
    n_rows = m_pad // tm

    x2 = x.reshape(M, C)
    if m_pad != M:
        x2 = jnp.pad(x2, ((0, m_pad - M), (0, 0)))

    # bf16 operands, f32 accumulation (MXU bf16 path on v5e/v6e/v7x).
    xc = x2.astype(compute_dtype)
    w1c = w1_t.astype(compute_dtype)
    w2c = w2_t.astype(compute_dtype)
    b1_2 = b1.reshape(1, H).astype(jnp.float32)
    b2_2 = b2.reshape(1, C).astype(jnp.float32)

    est = (_vmem_resident_bytes(tm, C, H, in_b, out_b) if mode == "resident"
           else _vmem_streamed_bytes(tm, th, C, in_b, out_b))
    # Never request more than the physical per-core VMEM (v7x: 64 MiB).
    vmem_limit = int(min(max(int(1.5 * est), 32 * 1024 * 1024),
                         int(vmem_cap * 0.9)))

    weight_bytes = (w1c.size + w2c.size) * in_b
    weight_passes = 1 if mode == "resident" else n_rows
    cost = pl.CostEstimate(
        flops=4 * m_pad * C * H,                  # two matmuls, 2*M*C*H each
        transcendentals=m_pad * H,                # erf per hidden element
        bytes_accessed=(xc.size * in_b
                        + weight_passes * weight_bytes
                        + b1_2.size * 4 + b2_2.size * 4
                        + m_pad * C * out_b),
    )

    if mode == "resident":
        grid = (n_rows,)
        grid_spec = pltpu.PrefetchScalarGridSpec(
            num_scalar_prefetch=0,
            grid=grid,
            in_specs=[
                pl.BlockSpec((tm, C), lambda i: (i, 0)),   # x row tile
                pl.BlockSpec((C, H), lambda i: (0, 0)),    # W1 (resident)
                pl.BlockSpec((1, H), lambda i: (0, 0)),    # b1 (resident)
                pl.BlockSpec((H, C), lambda i: (0, 0)),    # W2 (resident)
                pl.BlockSpec((1, C), lambda i: (0, 0)),    # b2 (resident)
            ],
            out_specs=pl.BlockSpec((tm, C), lambda i: (i, 0)),
            scratch_shapes=[],
        )
        kernel = mlp_kernel_resident
        dim_sem = ("parallel",)
    else:
        grid = (n_rows, H // th)
        grid_spec = pltpu.PrefetchScalarGridSpec(
            num_scalar_prefetch=0,
            grid=grid,
            in_specs=[
                pl.BlockSpec((tm, C), lambda i, k: (i, 0)),   # x row tile
                pl.BlockSpec((C, th), lambda i, k: (0, k)),   # W1 H-slab
                pl.BlockSpec((1, th), lambda i, k: (0, k)),   # b1 slab
                pl.BlockSpec((th, C), lambda i, k: (k, 0)),   # W2 H-slab
                pl.BlockSpec((1, C), lambda i, k: (0, 0)),    # b2
            ],
            out_specs=pl.BlockSpec((tm, C), lambda i, k: (i, 0)),
            scratch_shapes=[pltpu.VMEM((tm, C), jnp.float32)],
        )
        kernel = mlp_kernel_streamed
        dim_sem = ("parallel", "arbitrary")

    out2 = pl.pallas_call(
        kernel,
        out_shape=jax.ShapeDtypeStruct((m_pad, C), out_dtype),
        grid_spec=grid_spec,
        compiler_params=pltpu.CompilerParams(
            dimension_semantics=dim_sem,
            vmem_limit_bytes=vmem_limit,
        ),
        cost_estimate=cost,
    )(xc, w1c, b1_2, w2c, b2_2)

    return out2[:M].reshape(B, T, C)


# ----------------------------------------------------------------------------
# Demo / correctness check
# ----------------------------------------------------------------------------
def init_params(key, n_embd):
    """Deterministic init matching nn.Linear default (U(-1/sqrt(fan_in), +))."""
    hidden = int(3.5 * n_embd)
    k1, k2, k3, k4 = jax.random.split(key, 4)
    bound_fc = 1.0 / math.sqrt(n_embd)
    bound_pr = 1.0 / math.sqrt(hidden)
    # Stored already transposed relative to PyTorch (in, out) for row-major matmul.
    w1_t = jax.random.uniform(k1, (n_embd, hidden), jnp.float32, -bound_fc, bound_fc)
    b1 = jax.random.uniform(k2, (hidden,), jnp.float32, -bound_fc, bound_fc)
    w2_t = jax.random.uniform(k3, (hidden, n_embd), jnp.float32, -bound_pr, bound_pr)
    b2 = jax.random.uniform(k4, (n_embd,), jnp.float32, -bound_pr, bound_pr)
    return w1_t, b1, w2_t, b2


if __name__ == "__main__":
    # config: n_embd=256 (hidden = 3.5 * 256 = 896), bias=True, dropout=0.0
    n_embd = 256
    B, T = 2, 8

    key = jax.random.PRNGKey(0)
    kx, kp = jax.random.split(key)
    x = jax.random.normal(kx, (B, T, n_embd), dtype=jnp.float32)
    w1_t, b1, w2_t, b2 = init_params(kp, n_embd)

    out = mlp_pallas(x, w1_t, b1, w2_t, b2)
    out = jax.block_until_ready(out)

    # Reference 1: same bf16-operand / f32-accumulation path as the kernel.
    x2 = x.reshape(-1, n_embd)
    h_ref = jnp.dot(x2.astype(jnp.bfloat16), w1_t.astype(jnp.bfloat16),
                    preferred_element_type=jnp.float32) + b1
    h_ref = 0.5 * h_ref * (1.0 + jax.lax.erf(h_ref / jnp.sqrt(2.0)))
    y_ref = jnp.dot(h_ref.astype(jnp.bfloat16), w2_t.astype(jnp.bfloat16),
                    preferred_element_type=jnp.float32) + b2
    y_ref = y_ref.reshape(B, T, n_embd)
    assert jnp.allclose(out, y_ref, atol=5e-3, rtol=5e-3), "mismatch vs bf16 reference"

    # Reference 2: pure f32 reference (loose tolerance; bf16 operand rounding).
    h32 = x2 @ w1_t + b1
    h32 = 0.5 * h32 * (1.0 + jax.lax.erf(h32 / jnp.sqrt(2.0)))
    y32 = (h32 @ w2_t + b2).reshape(B, T, n_embd)
    assert jnp.allclose(out, y32, atol=5e-2, rtol=5e-2), "mismatch vs f32 reference"

    print("KERNEL_OK")
</pallas_src>

<mosaic_0001>
module attributes {stable_mosaic.version = 11 : i64} {
  func.func @mlp_kernel_resident(%arg0: i32, %arg1: memref<16x256xbf16, #tpu.memory_space<vmem>>, %arg2: memref<256x896xbf16, #tpu.memory_space<vmem>>, %arg3: memref<1x896xf32, #tpu.memory_space<vmem>>, %arg4: memref<896x256xbf16, #tpu.memory_space<vmem>>, %arg5: memref<1x256xf32, #tpu.memory_space<vmem>>, %arg6: memref<16x256xf32, #tpu.memory_space<vmem>>) attributes {dimension_semantics = [#tpu.dimension_semantics<parallel>], iteration_bounds = array<i64: 1>, scalar_prefetch = 0 : i64, scratch_operands = 0 : i64, tpu.core_type = #tpu.core_type<tc>, window_params = [{transform_indices = @transform_0, window_bounds = array<i64: 16, 256>}, {pipeline_mode = #tpu.pipeline_mode<synchronous>, transform_indices = @transform_1, window_bounds = array<i64: 256, 896>}, {pipeline_mode = #tpu.pipeline_mode<synchronous>, transform_indices = @transform_2, window_bounds = array<i64: 1, 896>}, {pipeline_mode = #tpu.pipeline_mode<synchronous>, transform_indices = @transform_3, window_bounds = array<i64: 896, 256>}, {pipeline_mode = #tpu.pipeline_mode<synchronous>, transform_indices = @transform_4, window_bounds = array<i64: 1, 256>}, {transform_indices = @transform_5, window_bounds = array<i64: 16, 256>}]} {
    %c0 = arith.constant 0 : index
    %c0_0 = arith.constant 0 : index
    %0 = vector.load %arg1[%c0, %c0_0] : memref<16x256xbf16, #tpu.memory_space<vmem>>, vector<16x256xbf16>
    %c0_1 = arith.constant 0 : index
    %c0_2 = arith.constant 0 : index
    %1 = vector.load %arg2[%c0_1, %c0_2] : memref<256x896xbf16, #tpu.memory_space<vmem>>, vector<256x896xbf16>
    %cst = arith.constant dense<0.000000e+00> : vector<16x896xf32>
    %2 = tpu.matmul %0, %1, %cst {dimension_numbers = #tpu.dot_dimension_numbers<[1], [0], [0], [1], [0, 0, 1, 1], [], []>} : vector<16x256xbf16>, vector<256x896xbf16>, vector<16x896xf32> -> vector<16x896xf32>
    %c0_3 = arith.constant 0 : index
    %c0_4 = arith.constant 0 : index
    %3 = vector.load %arg3[%c0_3, %c0_4] : memref<1x896xf32, #tpu.memory_space<vmem>>, vector<1x896xf32>
    %4 = vector.broadcast %3 : vector<1x896xf32> to vector<16x896xf32>
    %5 = arith.addf %2, %4 : vector<16x896xf32>
    %cst_5 = arith.constant 5.000000e-01 : f32
    %6 = vector.broadcast %cst_5 : f32 to vector<16x896xf32>
    %7 = arith.mulf %6, %5 : vector<16x896xf32>
    %cst_6 = arith.constant 0.707106769 : f32
    %8 = vector.broadcast %cst_6 : f32 to vector<16x896xf32>
    %9 = arith.mulf %5, %8 : vector<16x896xf32>
    %10 = math.erf %9 : vector<16x896xf32>
    %cst_7 = arith.constant 1.000000e+00 : f32
    %11 = vector.broadcast %cst_7 : f32 to vector<16x896xf32>
    %12 = arith.addf %11, %10 : vector<16x896xf32>
    %13 = arith.mulf %7, %12 : vector<16x896xf32>
    %14 = arith.truncf %13 : vector<16x896xf32> to vector<16x896xbf16>
    %c0_8 = arith.constant 0 : index
    %c0_9 = arith.constant 0 : index
    %15 = vector.load %arg4[%c0_8, %c0_9] : memref<896x256xbf16, #tpu.memory_space<vmem>>, vector<896x256xbf16>
    %cst_10 = arith.constant dense<0.000000e+00> : vector<16x256xf32>
    %16 = tpu.matmul %14, %15, %cst_10 {dimension_numbers = #tpu.dot_dimension_numbers<[1], [0], [0], [1], [0, 0, 1, 1], [], []>} : vector<16x896xbf16>, vector<896x256xbf16>, vector<16x256xf32> -> vector<16x256xf32>
    %c0_11 = arith.constant 0 : index
    %c0_12 = arith.constant 0 : index
    %17 = vector.load %arg5[%c0_11, %c0_12] : memref<1x256xf32, #tpu.memory_space<vmem>>, vector<1x256xf32>
    %18 = vector.broadcast %17 : vector<1x256xf32> to vector<16x256xf32>
    %19 = arith.addf %16, %18 : vector<16x256xf32>
    %c0_13 = arith.constant 0 : index
    %c0_14 = arith.constant 0 : index
    %20 = vector.load %arg6[%c0_13, %c0_14] : memref<16x256xf32, #tpu.memory_space<vmem>>, vector<16x256xf32>
    tpu.vector_store %arg6[%c0_13, %c0_14], %19 {strides = array<i32>} : memref<16x256xf32, #tpu.memory_space<vmem>>, vector<16x256xf32>,
    return
  }
  func.func @transform_0(%arg0: i32) -> (i32, i32) {
    %c0_i32 = arith.constant 0 : i32
    %c0_i32_0 = arith.constant 0 : i32
    return %arg0, %c0_i32 : i32, i32
  }
  func.func @transform_1(%arg0: i32) -> (i32, i32) {
    %c0_i32 = arith.constant 0 : i32
    %c0_i32_0 = arith.constant 0 : i32
    %c0_i32_1 = arith.constant 0 : i32
    return %c0_i32, %c0_i32_0 : i32, i32
  }
  func.func @transform_2(%arg0: i32) -> (i32, i32) {
    %c0_i32 = arith.constant 0 : i32
    %c0_i32_0 = arith.constant 0 : i32
    %c0_i32_1 = arith.constant 0 : i32
    return %c0_i32, %c0_i32_0 : i32, i32
  }
  func.func @transform_3(%arg0: i32) -> (i32, i32) {
    %c0_i32 = arith.constant 0 : i32
    %c0_i32_0 = arith.constant 0 : i32
    %c0_i32_1 = arith.constant 0 : i32
    return %c0_i32, %c0_i32_0 : i32, i32
  }
  func.func @transform_4(%arg0: i32) -> (i32, i32) {
    %c0_i32 = arith.constant 0 : i32
    %c0_i32_0 = arith.constant 0 : i32
    %c0_i32_1 = arith.constant 0 : i32
    return %c0_i32, %c0_i32_0 : i32, i32
  }
  func.func @transform_5(%arg0: i32) -> (i32, i32) {
    %c0_i32 = arith.constant 0 : i32
    %c0_i32_0 = arith.constant 0 : i32
    return %arg0, %c0_i32 : i32, i32
  }
}

</mosaic_0001>

<llo_original>
// kernel: tpu_custom_call.1
$region0: #{tpu_custom_call.1}
  #allocation0 [shape = 'u32[]', space=smem, size = 0x4, offset = 0x4, fixed_abs, tag = 'smem constant byte address 0x4 - core index']
  #allocation1 [shape = 'u32[72,128]{1,0:T(1,128)}', space=vmem, size = 0x9000, scoped, tag = 'internal scratch']
  %s0 = inlined_call_operand.hbm [shape: bf16[16,256], index: 0, kind: input, shape index: {}]
  %s1 = inlined_call_operand.hbm [shape: bf16[256,896], index: 1, kind: input, shape index: {}]
  %s2 = inlined_call_operand.hbm [shape: f32[1,896], index: 2, kind: input, shape index: {}]
  %s3 = inlined_call_operand.hbm [shape: bf16[896,256], index: 3, kind: input, shape index: {}]
  %s4 = inlined_call_operand.vmem [shape: f32[1,256], index: 4, kind: input, shape index: {}]
  %s5 = inlined_call_operand.hbm [shape: f32[16,256], index: 5, kind: output, shape index: {}]
  %s6 = sld [smem:[#allocation0]]
  $region46: #{tpu_custom_call.1} parent=0
    _
  %s8 = ssub.s32 1, %s6
  %s9 = scalar_select 0, %s8, %s6
  $region1: #{tpu_custom_call.1} parent=0
    #allocation2 [shape = 'u8[8192]{0}', space=vmem, size = 0x2000, scoped, tag = 'input window, operand 0, single buffered']
    #allocation3 [shape = 's32[1]{0}', space=sflag, size = 0x4, scoped, tag = 'scoped memory for tpu_custom_call.1']
    #allocation4 [shape = 's32[1]{0}', space=sflag, size = 0x4, scoped, tag = 'scoped memory for tpu_custom_call.1']
    #allocation5 [shape = 'u8[458752]{0}', space=vmem, size = 0x70000, scoped, tag = 'input window, operand 1, single buffered']
    #allocation6 [shape = 's32[1]{0}', space=sflag, size = 0x4, scoped, tag = 'scoped memory for tpu_custom_call.1']
    #allocation7 [shape = 'u8[3584]{0}', space=vmem, size = 0x1000, scoped, tag = 'input window, operand 2, single buffered']
    #allocation8 [shape = 'u8[458752]{0}', space=vmem, size = 0x70000, scoped, tag = 'input window, operand 3, single buffered']
    #allocation9 [shape = 's32[1]{0}', space=sflag, size = 0x4, scoped, tag = 'scoped memory for tpu_custom_call.1']
    #allocation10 [shape = 'u8[16384]{0}', space=vmem, size = 0x4000, scoped, tag = 'output window, operand 0, single buffered']
    %10 = vsyncpa [#allocation3], 0
    %11 = vsyncpa [#allocation6], 0
    %12 = vsyncpa [#allocation9], 0
    %13 = vsyncpa [#allocation4], 0
    // Predicated region
    $region2: #{tpu_custom_call.1} parent=1 // pred_check
      _
    $region3: #{tpu_custom_call.1} parent=1 // pred_check_branch
      %15 = sbr.rel (0) target = $region5
    $region4: #{tpu_custom_call.1} parent=1 // pred_region
      %17 = vsyncadd [#allocation3], 0
      %s18 = sshll.u32 %s0, 4
      %s19 = int_to_ptr.hbm [resolvable:$true] %s18
      %s20 = sshll.u32 [#allocation2], 4
      %s21 = int_to_ptr.vmem [resolvable:$true] %s20
      %26 = dma.hbm_to_vmem [thread:$0]  %s19, 256, %s21, [#allocation3], 128, 128, 8
    $region5: #{tpu_custom_call.1} parent=1 // pred_fallthru
      _
    // Predicated region
    $region6: #{tpu_custom_call.1} parent=1 // pred_check
      _
    $region7: #{tpu_custom_call.1} parent=1 // pred_check_branch
      %28 = sbr.rel (0) target = $region9
    $region8: #{tpu_custom_call.1} parent=1 // pred_region
      %30 = vsyncadd [#allocation6], 0
      %s31 = sshll.u32 %s1, 4
      %s32 = int_to_ptr.hbm [resolvable:$true] %s31
      %s33 = sshll.u32 [#allocation5], 4
      %s34 = int_to_ptr.vmem [resolvable:$true] %s33
      %39 = dma.hbm_to_vmem [thread:$0]  %s32, 14336, %s34, [#allocation6], 448, 448, 28
    $region9: #{tpu_custom_call.1} parent=1 // pred_fallthru
      _
    // Predicated region
    $region10: #{tpu_custom_call.1} parent=1 // pred_check
      _
    $region11: #{tpu_custom_call.1} parent=1 // pred_check_branch
      %41 = sbr.rel (0) target = $region13
    $region12: #{tpu_custom_call.1} parent=1 // pred_region
      %43 = vsyncadd [#allocation6], 0
      %s45 = sshll.u32 %s2, 4
      %s46 = int_to_ptr.hbm [resolvable:$true] %s45
      %s47 = sshll.u32 [#allocation7], 4
      %s48 = int_to_ptr.vmem [resolvable:$true] %s47
      %50 = dma.hbm_to_vmem [thread:$0]  %s46, 112, %s48, [#allocation6]
    $region13: #{tpu_custom_call.1} parent=1 // pred_fallthru
      _
    // Predicated region
    $region14: #{tpu_custom_call.1} parent=1 // pred_check
      _
    $region15: #{tpu_custom_call.1} parent=1 // pred_check_branch
      %52 = sbr.rel (0) target = $region17
    $region16: #{tpu_custom_call.1} parent=1 // pred_region
      %54 = vsyncadd [#allocation9], 0
      %s55 = sshll.u32 %s3, 4
      %s56 = int_to_ptr.hbm [resolvable:$true] %s55
      %s57 = sshll.u32 [#allocation8], 4
      %s58 = int_to_ptr.vmem [resolvable:$true] %s57
      %63 = dma.hbm_to_vmem [thread:$0]  %s56, 14336, %s58, [#allocation9], 128, 128, 8
    $region17: #{tpu_custom_call.1} parent=1 // pred_fallthru
      _
    // Predicated region
    $region18: #{tpu_custom_call.1} parent=1 // pred_check
      _
    $region19: #{tpu_custom_call.1} parent=1 // pred_check_branch
      %65 = sbr.rel (0) target = $region21
    $region20: #{tpu_custom_call.1} parent=1 // pred_region
      _
    $region21: #{tpu_custom_call.1} parent=1 // pred_fallthru
      _
    // Predicated region
    $region22: #{tpu_custom_call.1} parent=1 // pred_check
      _
    $region23: #{tpu_custom_call.1} parent=1 // pred_check_branch
      %67 = sbr.rel (0) target = $region25
    $region24: #{tpu_custom_call.1} parent=1 // pred_region
      %69 = dma.done [#allocation3], 256
    $region25: #{tpu_custom_call.1} parent=1 // pred_fallthru
      _
    // Predicated region
    $region26: #{tpu_custom_call.1} parent=1 // pred_check
      _
    $region27: #{tpu_custom_call.1} parent=1 // pred_check_branch
      %71 = sbr.rel (0) target = $region29
    $region28: #{tpu_custom_call.1} parent=1 // pred_region
      %73 = dma.done [#allocation6], 14336
    $region29: #{tpu_custom_call.1} parent=1 // pred_fallthru
      _
    // Predicated region
    $region30: #{tpu_custom_call.1} parent=1 // pred_check
      _
    $region31: #{tpu_custom_call.1} parent=1 // pred_check_branch
      %75 = sbr.rel (0) target = $region33
    $region32: #{tpu_custom_call.1} parent=1 // pred_region
      %77 = dma.done [#allocation6], 112
    $region33: #{tpu_custom_call.1} parent=1 // pred_fallthru
      _
    // Predicated region
    $region34: #{tpu_custom_call.1} parent=1 // pred_check
      _
    $region35: #{tpu_custom_call.1} parent=1 // pred_check_branch
      %79 = sbr.rel (0) target = $region37
    $region36: #{tpu_custom_call.1} parent=1 // pred_region
      %81 = dma.done [#allocation9], 14336
    $region37: #{tpu_custom_call.1} parent=1 // pred_fallthru
      _
    %v82 = vld [vmem:[#allocation2] sm:$0xff]
    %v83 = vld [vmem:[#allocation2 + $0x8] sm:$0xff]
    %v84 = vld [vmem:[#allocation5] sm:$0xff]
    %v85 = vld [vmem:[#allocation5 + $0x8] sm:$0xff]
    %v86 = vld [vmem:[#allocation5 + $0x10] sm:$0xff]
    %v87 = vld [vmem:[#allocation5 + $0x18] sm:$0xf]
    %v88 = vld [vmem:[#allocation5 + $0x1c] sm:$0xff]
    %v89 = vld [vmem:[#allocation5 + $0x24] sm:$0xff]
    %v90 = vld [vmem:[#allocation5 + $0x2c] sm:$0xff]
    %v91 = vld [vmem:[#allocation5 + $0x34] sm:$0xf]
    %v92 = vld [vmem:[#allocation5 + $0x38] sm:$0xff]
    %v93 = vld [vmem:[#allocation5 + $0x40] sm:$0xff]
    %v94 = vld [vmem:[#allocation5 + $0x48] sm:$0xff]
    %v95 = vld [vmem:[#allocation5 + $0x50] sm:$0xf]
    %v96 = vld [vmem:[#allocation5 + $0x54] sm:$0xff]
    %v97 = vld [vmem:[#allocation5 + $0x5c] sm:$0xff]
    %v98 = vld [vmem:[#allocation5 + $0x64] sm:$0xff]
    %v99 = vld [vmem:[#allocation5 + $0x6c] sm:$0xf]
    %v100 = vld [vmem:[#allocation5 + $0x70] sm:$0xff]
    %v101 = vld [vmem:[#allocation5 + $0x78] sm:$0xff]
    %v102 = vld [vmem:[#allocation5 + $0x80] sm:$0xff]
    %v103 = vld [vmem:[#allocation5 + $0x88] sm:$0xf]
    %v104 = vld [vmem:[#allocation5 + $0x8c] sm:$0xff]
    %v105 = vld [vmem:[#allocation5 + $0x94] sm:$0xff]
    %v106 = vld [vmem:[#allocation5 + $0x9c] sm:$0xff]
    %v107 = vld [vmem:[#allocation5 + $0xa4] sm:$0xf]
    %v108 = vld [vmem:[#allocation5 + $0xa8] sm:$0xff]
    %v109 = vld [vmem:[#allocation5 + $0xb0] sm:$0xff]
    %v110 = vld [vmem:[#allocation5 + $0xb8] sm:$0xff]
    %v111 = vld [vmem:[#allocation5 + $0xc0] sm:$0xf]
    %v112 = vld [vmem:[#allocation5 + $0xc4] sm:$0xff]
    %v113 = vld [vmem:[#allocation5 + $0xcc] sm:$0xff]
    %v114 = vld [vmem:[#allocation5 + $0xd4] sm:$0xff]
    %v115 = vld [vmem:[#allocation5 + $0xdc] sm:$0xf]
    %v116 = vld [vmem:[#allocation5 + $0xe0] sm:$0xff]
    %v117 = vld [vmem:[#allocation5 + $0xe8] sm:$0xff]
    %v118 = vld [vmem:[#allocation5 + $0xf0] sm:$0xff]
    %v119 = vld [vmem:[#allocation5 + $0xf8] sm:$0xf]
    %v120 = vld [vmem:[#allocation5 + $0xfc] sm:$0xff]
    %v121 = vld [vmem:[#allocation5 + $0x104] sm:$0xff]
    %v122 = vld [vmem:[#allocation5 + $0x10c] sm:$0xff]
    %v123 = vld [vmem:[#allocation5 + $0x114] sm:$0xf]
    %v124 = vld [vmem:[#allocation5 + $0x118] sm:$0xff]
    %v125 = vld [vmem:[#allocation5 + $0x120] sm:$0xff]
    %v126 = vld [vmem:[#allocation5 + $0x128] sm:$0xff]
    %v127 = vld [vmem:[#allocation5 + $0x130] sm:$0xf]
    %v128 = vld [vmem:[#allocation5 + $0x134] sm:$0xff]
    %v129 = vld [vmem:[#allocation5 + $0x13c] sm:$0xff]
    %v130 = vld [vmem:[#allocation5 + $0x144] sm:$0xff]
    %v131 = vld [vmem:[#allocation5 + $0x14c] sm:$0xf]
    %v132 = vld [vmem:[#allocation5 + $0x150] sm:$0xff]
    %v133 = vld [vmem:[#allocation5 + $0x158] sm:$0xff]
    %v134 = vld [vmem:[#allocation5 + $0x160] sm:$0xff]
    %v135 = vld [vmem:[#allocation5 + $0x168] sm:$0xf]
    %v136 = vld [vmem:[#allocation5 + $0x16c] sm:$0xff]
    %v137 = vld [vmem:[#allocation5 + $0x174] sm:$0xff]
    %v138 = vld [vmem:[#allocation5 + $0x17c] sm:$0xff]
    %v139 = vld [vmem:[#allocation5 + $0x184] sm:$0xf]
    %v140 = vld [vmem:[#allocation5 + $0x188] sm:$0xff]
    %v141 = vld [vmem:[#allocation5 + $0x190] sm:$0xff]
    %v142 = vld [vmem:[#allocation5 + $0x198] sm:$0xff]
    %v143 = vld [vmem:[#allocation5 + $0x1a0] sm:$0xf]
    %v144 = vld [vmem:[#allocation5 + $0x1a4] sm:$0xff]
    %v145 = vld [vmem:[#allocation5 + $0x1ac] sm:$0xff]
    %v146 = vld [vmem:[#allocation5 + $0x1b4] sm:$0xff]
    %v147 = vld [vmem:[#allocation5 + $0x1bc] sm:$0xf]
    %v148 = vld [vmem:[#allocation5 + $0x1c0] sm:$0xff]
    %v149 = vld [vmem:[#allocation5 + $0x1c8] sm:$0xff]
    %v150 = vld [vmem:[#allocation5 + $0x1d0] sm:$0xff]
    %v151 = vld [vmem:[#allocation5 + $0x1d8] sm:$0xf]
    %v152 = vld [vmem:[#allocation5 + $0x1dc] sm:$0xff]
    %v153 = vld [vmem:[#allocation5 + $0x1e4] sm:$0xff]
    %v154 = vld [vmem:[#allocation5 + $0x1ec] sm:$0xff]
    %v155 = vld [vmem:[#allocation5 + $0x1f4] sm:$0xf]
    %v156 = vld [vmem:[#allocation5 + $0x1f8] sm:$0xff]
    %v157 = vld [vmem:[#allocation5 + $0x200] sm:$0xff]
    %v158 = vld [vmem:[#allocation5 + $0x208] sm:$0xff]
    %v159 = vld [vmem:[#allocation5 + $0x210] sm:$0xf]
    %v160 = vld [vmem:[#allocation5 + $0x214] sm:$0xff]
    %v161 = vld [vmem:[#allocation5 + $0x21c] sm:$0xff]
    %v162 = vld [vmem:[#allocation5 + $0x224] sm:$0xff]
    %v163 = vld [vmem:[#allocation5 + $0x22c] sm:$0xf]
    %v164 = vld [vmem:[#allocation5 + $0x230] sm:$0xff]
    %v165 = vld [vmem:[#allocation5 + $0x238] sm:$0xff]
    %v166 = vld [vmem:[#allocation5 + $0x240] sm:$0xff]
    %v167 = vld [vmem:[#allocation5 + $0x248] sm:$0xf]
    %v168 = vld [vmem:[#allocation5 + $0x24c] sm:$0xff]
    %v169 = vld [vmem:[#allocation5 + $0x254] sm:$0xff]
    %v170 = vld [vmem:[#allocation5 + $0x25c] sm:$0xff]
    %v171 = vld [vmem:[#allocation5 + $0x264] sm:$0xf]
    %v172 = vld [vmem:[#allocation5 + $0x268] sm:$0xff]
    %v173 = vld [vmem:[#allocation5 + $0x270] sm:$0xff]
    %v174 = vld [vmem:[#allocation5 + $0x278] sm:$0xff]
    %v175 = vld [vmem:[#allocation5 + $0x280] sm:$0xf]
    %v176 = vld [vmem:[#allocation5 + $0x284] sm:$0xff]
    %v177 = vld [vmem:[#allocation5 + $0x28c] sm:$0xff]
    %v178 = vld [vmem:[#allocation5 + $0x294] sm:$0xff]
    %v179 = vld [vmem:[#allocation5 + $0x29c] sm:$0xf]
    %v180 = vld [vmem:[#allocation5 + $0x2a0] sm:$0xff]
    %v181 = vld [vmem:[#allocation5 + $0x2a8] sm:$0xff]
    %v182 = vld [vmem:[#allocation5 + $0x2b0] sm:$0xff]
    %v183 = vld [vmem:[#allocation5 + $0x2b8] sm:$0xf]
    %v184 = vld [vmem:[#allocation5 + $0x2bc] sm:$0xff]
    %v185 = vld [vmem:[#allocation5 + $0x2c4] sm:$0xff]
    %v186 = vld [vmem:[#allocation5 + $0x2cc] sm:$0xff]
    %v187 = vld [vmem:[#allocation5 + $0x2d4] sm:$0xf]
    %v188 = vld [vmem:[#allocation5 + $0x2d8] sm:$0xff]
    %v189 = vld [vmem:[#allocation5 + $0x2e0] sm:$0xff]
    %v190 = vld [vmem:[#allocation5 + $0x2e8] sm:$0xff]
    %v191 = vld [vmem:[#allocation5 + $0x2f0] sm:$0xf]
    %v192 = vld [vmem:[#allocation5 + $0x2f4] sm:$0xff]
    %v193 = vld [vmem:[#allocation5 + $0x2fc] sm:$0xff]
    %v194 = vld [vmem:[#allocation5 + $0x304] sm:$0xff]
    %v195 = vld [vmem:[#allocation5 + $0x30c] sm:$0xf]
    %v196 = vld [vmem:[#allocation5 + $0x310] sm:$0xff]
    %v197 = vld [vmem:[#allocation5 + $0x318] sm:$0xff]
    %v198 = vld [vmem:[#allocation5 + $0x320] sm:$0xff]
    %v199 = vld [vmem:[#allocation5 + $0x328] sm:$0xf]
    %v200 = vld [vmem:[#allocation5 + $0x32c] sm:$0xff]
    %v201 = vld [vmem:[#allocation5 + $0x334] sm:$0xff]
    %v202 = vld [vmem:[#allocation5 + $0x33c] sm:$0xff]
    %v203 = vld [vmem:[#allocation5 + $0x344] sm:$0xf]
    %v204 = vld [vmem:[#allocation5 + $0x348] sm:$0xff]
    %v205 = vld [vmem:[#allocation5 + $0x350] sm:$0xff]
    %v206 = vld [vmem:[#allocation5 + $0x358] sm:$0xff]
    %v207 = vld [vmem:[#allocation5 + $0x360] sm:$0xf]
    %v208 = vld [vmem:[#allocation5 + $0x364] sm:$0xff]
    %v209 = vld [vmem:[#allocation5 + $0x36c] sm:$0xff]
    %v210 = vld [vmem:[#allocation5 + $0x374] sm:$0xff]
    %v211 = vld [vmem:[#allocation5 + $0x37c] sm:$0xf]
    %v212 = vld [vmem:[#allocation7] sm:$0xff]
    %v214 = vperm.slane %v212, 0
    %v215 = vperm.slane %v212, 1
    %v216 = vperm.slane %v212, 2
    %v217 = vperm.slane %v212, 3
    %v218 = vperm.slane %v212, 4
    %v219 = vperm.slane %v212, 5
    %v220 = vperm.slane %v212, 6
    %v230 = vunpack.c.l.b16 %v82
    %v231 = vunpack.c.h.b16 %v82
    %v232 = vunpack.c.l.b16 %v83
    %v233 = vunpack.c.h.b16 %v83
    %v234 = vpack.c.b16 %v232, %v230
    %v235 = vpack.c.b16 %v233, %v231
    %v366 = vunpack.c.l.b16 %v84
    %v367 = vunpack.c.h.b16 %v84
    %v368 = vunpack.c.l.b16 %v85
    %v369 = vunpack.c.h.b16 %v85
    %v370 = vunpack.c.l.b16 %v86
    %v371 = vunpack.c.h.b16 %v86
    %v372 = vunpack.c.l.b16 %v87
    %v373 = vunpack.c.l.b16 %v88
    %v374 = vunpack.c.h.b16 %v88
    %v375 = vunpack.c.l.b16 %v89
    %v376 = vunpack.c.h.b16 %v89
    %v377 = vunpack.c.l.b16 %v90
    %v378 = vunpack.c.h.b16 %v90
    %v379 = vunpack.c.l.b16 %v91
    %v380 = vunpack.c.l.b16 %v92
    %v381 = vunpack.c.h.b16 %v92
    %v382 = vunpack.c.l.b16 %v93
    %v383 = vunpack.c.h.b16 %v93
    %v384 = vunpack.c.l.b16 %v94
    %v385 = vunpack.c.h.b16 %v94
    %v386 = vunpack.c.l.b16 %v95
    %v387 = vunpack.c.l.b16 %v96
    %v388 = vunpack.c.h.b16 %v96
    %v389 = vunpack.c.l.b16 %v97
    %v390 = vunpack.c.h.b16 %v97
    %v391 = vunpack.c.l.b16 %v98
    %v392 = vunpack.c.h.b16 %v98
    %v393 = vunpack.c.l.b16 %v99
    %v394 = vunpack.c.l.b16 %v100
    %v395 = vunpack.c.h.b16 %v100
    %v396 = vunpack.c.l.b16 %v101
    %v397 = vunpack.c.h.b16 %v101
    %v398 = vunpack.c.l.b16 %v102
    %v399 = vunpack.c.h.b16 %v102
    %v400 = vunpack.c.l.b16 %v103
    %v401 = vunpack.c.l.b16 %v104
    %v402 = vunpack.c.h.b16 %v104
    %v403 = vunpack.c.l.b16 %v105
    %v404 = vunpack.c.h.b16 %v105
    %v405 = vunpack.c.l.b16 %v106
    %v406 = vunpack.c.h.b16 %v106
    %v407 = vunpack.c.l.b16 %v107
    %v408 = vunpack.c.l.b16 %v108
    %v409 = vunpack.c.h.b16 %v108
    %v410 = vunpack.c.l.b16 %v109
    %v411 = vunpack.c.h.b16 %v109
    %v412 = vunpack.c.l.b16 %v110
    %v413 = vunpack.c.h.b16 %v110
    %v414 = vunpack.c.l.b16 %v111
    %v415 = vunpack.c.l.b16 %v112
    %v416 = vunpack.c.h.b16 %v112
    %v417 = vunpack.c.l.b16 %v113
    %v418 = vunpack.c.h.b16 %v113
    %v419 = vunpack.c.l.b16 %v114
    %v420 = vunpack.c.h.b16 %v114
    %v421 = vunpack.c.l.b16 %v115
    %v422 = vunpack.c.l.b16 %v116
    %v423 = vunpack.c.h.b16 %v116
    %v424 = vunpack.c.l.b16 %v117
    %v425 = vunpack.c.h.b16 %v117
    %v426 = vunpack.c.l.b16 %v118
    %v427 = vunpack.c.h.b16 %v118
    %v428 = vunpack.c.l.b16 %v119
    %v429 = vunpack.c.l.b16 %v120
    %v430 = vunpack.c.h.b16 %v120
    %v431 = vunpack.c.l.b16 %v121
    %v432 = vunpack.c.h.b16 %v121
    %v433 = vunpack.c.l.b16 %v122
    %v434 = vunpack.c.h.b16 %v122
    %v435 = vunpack.c.l.b16 %v123
    %v436 = vunpack.c.l.b16 %v124
    %v437 = vunpack.c.h.b16 %v124
    %v438 = vunpack.c.l.b16 %v125
    %v439 = vunpack.c.h.b16 %v125
    %v440 = vunpack.c.l.b16 %v126
    %v441 = vunpack.c.h.b16 %v126
    %v442 = vunpack.c.l.b16 %v127
    %v443 = vunpack.c.l.b16 %v128
    %v444 = vunpack.c.h.b16 %v128
    %v445 = vunpack.c.l.b16 %v129
    %v446 = vunpack.c.h.b16 %v129
    %v447 = vunpack.c.l.b16 %v130
    %v448 = vunpack.c.h.b16 %v130
    %v449 = vunpack.c.l.b16 %v131
    %v450 = vunpack.c.l.b16 %v132
    %v451 = vunpack.c.h.b16 %v132
    %v452 = vunpack.c.l.b16 %v133
    %v453 = vunpack.c.h.b16 %v133
    %v454 = vunpack.c.l.b16 %v134
    %v455 = vunpack.c.h.b16 %v134
    %v456 = vunpack.c.l.b16 %v135
    %v457 = vunpack.c.l.b16 %v136
    %v458 = vunpack.c.h.b16 %v136
    %v459 = vunpack.c.l.b16 %v137
    %v460 = vunpack.c.h.b16 %v137
    %v461 = vunpack.c.l.b16 %v138
    %v462 = vunpack.c.h.b16 %v138
    %v463 = vunpack.c.l.b16 %v139
    %v464 = vunpack.c.l.b16 %v140
    %v465 = vunpack.c.h.b16 %v140
    %v466 = vunpack.c.l.b16 %v141
    %v467 = vunpack.c.h.b16 %v141
    %v468 = vunpack.c.l.b16 %v142
    %v469 = vunpack.c.h.b16 %v142
    %v470 = vunpack.c.l.b16 %v143
    %v471 = vunpack.c.l.b16 %v144
    %v472 = vunpack.c.h.b16 %v144
    %v473 = vunpack.c.l.b16 %v145
    %v474 = vunpack.c.h.b16 %v145
    %v475 = vunpack.c.l.b16 %v146
    %v476 = vunpack.c.h.b16 %v146
    %v477 = vunpack.c.l.b16 %v147
    %v478 = vunpack.c.l.b16 %v148
    %v479 = vunpack.c.h.b16 %v148
    %v480 = vunpack.c.l.b16 %v149
    %v481 = vunpack.c.h.b16 %v149
    %v482 = vunpack.c.l.b16 %v150
    %v483 = vunpack.c.h.b16 %v150
    %v484 = vunpack.c.l.b16 %v151
    %v485 = vunpack.c.l.b16 %v152
    %v486 = vunpack.c.h.b16 %v152
    %v487 = vunpack.c.l.b16 %v153
    %v488 = vunpack.c.h.b16 %v153
    %v489 = vunpack.c.l.b16 %v154
    %v490 = vunpack.c.h.b16 %v154
    %v491 = vunpack.c.l.b16 %v155
    %v492 = vunpack.c.l.b16 %v156
    %v493 = vunpack.c.h.b16 %v156
    %v494 = vunpack.c.l.b16 %v157
    %v495 = vunpack.c.h.b16 %v157
    %v496 = vunpack.c.l.b16 %v158
    %v497 = vunpack.c.h.b16 %v158
    %v498 = vunpack.c.l.b16 %v159
    %v499 = vunpack.c.l.b16 %v160
    %v500 = vunpack.c.h.b16 %v160
    %v501 = vunpack.c.l.b16 %v161
    %v502 = vunpack.c.h.b16 %v161
    %v503 = vunpack.c.l.b16 %v162
    %v504 = vunpack.c.h.b16 %v162
    %v505 = vunpack.c.l.b16 %v163
    %v506 = vunpack.c.l.b16 %v164
    %v507 = vunpack.c.h.b16 %v164
    %v508 = vunpack.c.l.b16 %v165
    %v509 = vunpack.c.h.b16 %v165
    %v510 = vunpack.c.l.b16 %v166
    %v511 = vunpack.c.h.b16 %v166
    %v512 = vunpack.c.l.b16 %v167
    %v513 = vunpack.c.l.b16 %v168
    %v514 = vunpack.c.h.b16 %v168
    %v515 = vunpack.c.l.b16 %v169
    %v516 = vunpack.c.h.b16 %v169
    %v517 = vunpack.c.l.b16 %v170
    %v518 = vunpack.c.h.b16 %v170
    %v519 = vunpack.c.l.b16 %v171
    %v520 = vunpack.c.l.b16 %v172
    %v521 = vunpack.c.h.b16 %v172
    %v522 = vunpack.c.l.b16 %v173
    %v523 = vunpack.c.h.b16 %v173
    %v524 = vunpack.c.l.b16 %v174
    %v525 = vunpack.c.h.b16 %v174
    %v526 = vunpack.c.l.b16 %v175
    %v527 = vunpack.c.l.b16 %v176
    %v528 = vunpack.c.h.b16 %v176
    %v529 = vunpack.c.l.b16 %v177
    %v530 = vunpack.c.h.b16 %v177
    %v531 = vunpack.c.l.b16 %v178
    %v532 = vunpack.c.h.b16 %v178
    %v533 = vunpack.c.l.b16 %v179
    %v534 = vunpack.c.l.b16 %v180
    %v535 = vunpack.c.h.b16 %v180
    %v536 = vunpack.c.l.b16 %v181
    %v537 = vunpack.c.h.b16 %v181
    %v538 = vunpack.c.l.b16 %v182
    %v539 = vunpack.c.h.b16 %v182
    %v540 = vunpack.c.l.b16 %v183
    %v541 = vunpack.c.l.b16 %v184
    %v542 = vunpack.c.h.b16 %v184
    %v543 = vunpack.c.l.b16 %v185
    %v544 = vunpack.c.h.b16 %v185
    %v545 = vunpack.c.l.b16 %v186
    %v546 = vunpack.c.h.b16 %v186
    %v547 = vunpack.c.l.b16 %v187
    %v548 = vunpack.c.l.b16 %v188
    %v549 = vunpack.c.h.b16 %v188
    %v550 = vunpack.c.l.b16 %v189
    %v551 = vunpack.c.h.b16 %v189
    %v552 = vunpack.c.l.b16 %v190
    %v553 = vunpack.c.h.b16 %v190
    %v554 = vunpack.c.l.b16 %v191
    %v555 = vunpack.c.l.b16 %v192
    %v556 = vunpack.c.h.b16 %v192
    %v557 = vunpack.c.l.b16 %v193
    %v558 = vunpack.c.h.b16 %v193
    %v559 = vunpack.c.l.b16 %v194
    %v560 = vunpack.c.h.b16 %v194
    %v561 = vunpack.c.l.b16 %v195
    %v562 = vunpack.c.l.b16 %v196
    %v563 = vunpack.c.h.b16 %v196
    %v564 = vunpack.c.l.b16 %v197
    %v565 = vunpack.c.h.b16 %v197
    %v566 = vunpack.c.l.b16 %v198
    %v567 = vunpack.c.h.b16 %v198
    %v568 = vunpack.c.l.b16 %v199
    %v569 = vunpack.c.l.b16 %v200
    %v570 = vunpack.c.h.b16 %v200
    %v571 = vunpack.c.l.b16 %v201
    %v572 = vunpack.c.h.b16 %v201
    %v573 = vunpack.c.l.b16 %v202
    %v574 = vunpack.c.h.b16 %v202
    %v575 = vunpack.c.l.b16 %v203
    %v576 = vunpack.c.l.b16 %v204
    %v577 = vunpack.c.h.b16 %v204
    %v578 = vunpack.c.l.b16 %v205
    %v579 = vunpack.c.h.b16 %v205
    %v580 = vunpack.c.l.b16 %v206
    %v581 = vunpack.c.h.b16 %v206
    %v582 = vunpack.c.l.b16 %v207
    %v583 = vunpack.c.l.b16 %v208
    %v584 = vunpack.c.h.b16 %v208
    %v585 = vunpack.c.l.b16 %v209
    %v586 = vunpack.c.h.b16 %v209
    %v587 = vunpack.c.l.b16 %v210
    %v588 = vunpack.c.h.b16 %v210
    %v589 = vunpack.c.l.b16 %v211
    %v590 = vpack.c.b16 %v373, %v366
    %v591 = vpack.c.b16 %v374, %v367
    %v592 = vpack.c.b16 %v375, %v368
    %v593 = vpack.c.b16 %v376, %v369
    %v594 = vpack.c.b16 %v377, %v370
    %v595 = vpack.c.b16 %v378, %v371
    %v596 = vpack.c.b16 %v379, %v372
    %v597 = vpack.c.b16 %v387, %v380
    %v598 = vpack.c.b16 %v388, %v381
    %v599 = vpack.c.b16 %v389, %v382
    %v600 = vpack.c.b16 %v390, %v383
    %v601 = vpack.c.b16 %v391, %v384
    %v602 = vpack.c.b16 %v392, %v385
    %v603 = vpack.c.b16 %v393, %v386
    %v604 = vpack.c.b16 %v401, %v394
    %v605 = vpack.c.b16 %v402, %v395
    %v606 = vpack.c.b16 %v403, %v396
    %v607 = vpack.c.b16 %v404, %v397
    %v608 = vpack.c.b16 %v405, %v398
    %v609 = vpack.c.b16 %v406, %v399
    %v610 = vpack.c.b16 %v407, %v400
    %v611 = vpack.c.b16 %v415, %v408
    %v612 = vpack.c.b16 %v416, %v409
    %v613 = vpack.c.b16 %v417, %v410
    %v614 = vpack.c.b16 %v418, %v411
    %v615 = vpack.c.b16 %v419, %v412
    %v616 = vpack.c.b16 %v420, %v413
    %v617 = vpack.c.b16 %v421, %v414
    %v618 = vpack.c.b16 %v429, %v422
    %v619 = vpack.c.b16 %v430, %v423
    %v620 = vpack.c.b16 %v431, %v424
    %v621 = vpack.c.b16 %v432, %v425
    %v622 = vpack.c.b16 %v433, %v426
    %v623 = vpack.c.b16 %v434, %v427
    %v624 = vpack.c.b16 %v435, %v428
    %v625 = vpack.c.b16 %v443, %v436
    %v626 = vpack.c.b16 %v444, %v437
    %v627 = vpack.c.b16 %v445, %v438
    %v628 = vpack.c.b16 %v446, %v439
    %v629 = vpack.c.b16 %v447, %v440
    %v630 = vpack.c.b16 %v448, %v441
    %v631 = vpack.c.b16 %v449, %v442
    %v632 = vpack.c.b16 %v457, %v450
    %v633 = vpack.c.b16 %v458, %v451
    %v634 = vpack.c.b16 %v459, %v452
    %v635 = vpack.c.b16 %v460, %v453
    %v636 = vpack.c.b16 %v461, %v454
    %v637 = vpack.c.b16 %v462, %v455
    %v638 = vpack.c.b16 %v463, %v456
    %v639 = vpack.c.b16 %v471, %v464
    %v640 = vpack.c.b16 %v472, %v465
    %v641 = vpack.c.b16 %v473, %v466
    %v642 = vpack.c.b16 %v474, %v467
    %v643 = vpack.c.b16 %v475, %v468
    %v644 = vpack.c.b16 %v476, %v469
    %v645 = vpack.c.b16 %v477, %v470
    %v646 = vpack.c.b16 %v485, %v478
    %v647 = vpack.c.b16 %v486, %v479
    %v648 = vpack.c.b16 %v487, %v480
    %v649 = vpack.c.b16 %v488, %v481
    %v650 = vpack.c.b16 %v489, %v482
    %v651 = vpack.c.b16 %v490, %v483
    %v652 = vpack.c.b16 %v491, %v484
    %v653 = vpack.c.b16 %v499, %v492
    %v654 = vpack.c.b16 %v500, %v493
    %v655 = vpack.c.b16 %v501, %v494
    %v656 = vpack.c.b16 %v502, %v495
    %v657 = vpack.c.b16 %v503, %v496
    %v658 = vpack.c.b16 %v504, %v497
    %v659 = vpack.c.b16 %v505, %v498
    %v660 = vpack.c.b16 %v513, %v506
    %v661 = vpack.c.b16 %v514, %v507
    %v662 = vpack.c.b16 %v515, %v508
    %v663 = vpack.c.b16 %v516, %v509
    %v664 = vpack.c.b16 %v517, %v510
    %v665 = vpack.c.b16 %v518, %v511
    %v666 = vpack.c.b16 %v519, %v512
    %v667 = vpack.c.b16 %v527, %v520
    %v668 = vpack.c.b16 %v528, %v521
    %v669 = vpack.c.b16 %v529, %v522
    %v670 = vpack.c.b16 %v530, %v523
    %v671 = vpack.c.b16 %v531, %v524
    %v672 = vpack.c.b16 %v532, %v525
    %v673 = vpack.c.b16 %v533, %v526
    %v674 = vpack.c.b16 %v541, %v534
    %v675 = vpack.c.b16 %v542, %v535
    %v676 = vpack.c.b16 %v543, %v536
    %v677 = vpack.c.b16 %v544, %v537
    %v678 = vpack.c.b16 %v545, %v538
    %v679 = vpack.c.b16 %v546, %v539
    %v680 = vpack.c.b16 %v547, %v540
    %v681 = vpack.c.b16 %v555, %v548
    %v682 = vpack.c.b16 %v556, %v549
    %v683 = vpack.c.b16 %v557, %v550
    %v684 = vpack.c.b16 %v558, %v551
    %v685 = vpack.c.b16 %v559, %v552
    %v686 = vpack.c.b16 %v560, %v553
    %v687 = vpack.c.b16 %v561, %v554
    %v688 = vpack.c.b16 %v569, %v562
    %v689 = vpack.c.b16 %v570, %v563
    %v690 = vpack.c.b16 %v571, %v564
    %v691 = vpack.c.b16 %v572, %v565
    %v692 = vpack.c.b16 %v573, %v566
    %v693 = vpack.c.b16 %v574, %v567
    %v694 = vpack.c.b16 %v575, %v568
    %v695 = vpack.c.b16 %v583, %v576
    %v696 = vpack.c.b16 %v584, %v577
    %v697 = vpack.c.b16 %v585, %v578
    %v698 = vpack.c.b16 %v586, %v579
    %v699 = vpack.c.b16 %v587, %v580
    %v700 = vpack.c.b16 %v588, %v581
    %v701 = vpack.c.b16 %v589, %v582
    %814 = vmatpush.bf16.msra.mxu0 %v639
    %815 = vmatpush.bf16.msra.mxu0 %v632
    %816 = vmatpush.bf16.msra.mxu0 %v625
    %817 = vmatpush.bf16.msra.mxu0 %v618
    %818 = vmatpush.bf16.msra.mxu0 %v611
    %819 = vmatpush.bf16.msra.mxu0 %v604
    %820 = vmatpush.bf16.msra.mxu0 %v597
    %821 = vmatpush.bf16.msra.mxu0 %v590
    %822 = vmatmul.bf16.gmra.mxu0 %v234
    %v823 = vpop.f32.mrf.mxu0
    %v824 = vadd.f32 %v214, %v823
    %v825 = vpop.f32.mrf.mxu0
    %v826 = vadd.f32 %v214, %v825
    %827 = vdwg.mxu0
    %828 = vmatpush.bf16.msra.mxu0 %v695
    %829 = vmatpush.bf16.msra.mxu0 %v688
    %830 = vmatpush.bf16.msra.mxu0 %v681
    %831 = vmatpush.bf16.msra.mxu0 %v674
    %832 = vmatpush.bf16.msra.mxu0 %v667
    %833 = vmatpush.bf16.msra.mxu0 %v660
    %834 = vmatpush.bf16.msra.mxu0 %v653
    %835 = vmatpush.bf16.msra.mxu0 %v646
    %836 = vmatmul.bf16.gmra.mxu0 %v235
    %v837 = vpop.f32.mrf.mxu0
    %v838 = vadd.f32 %v824, %v837
    %v839 = vpop.f32.mrf.mxu0
    %v840 = vadd.f32 %v826, %v839
    %841 = vdwg.mxu0
    %842 = vmatpush.bf16.msra.mxu0 %v640
    %843 = vmatpush.bf16.msra.mxu0 %v633
    %844 = vmatpush.bf16.msra.mxu0 %v626
    %845 = vmatpush.bf16.msra.mxu0 %v619
    %846 = vmatpush.bf16.msra.mxu0 %v612
    %847 = vmatpush.bf16.msra.mxu0 %v605
    %848 = vmatpush.bf16.msra.mxu0 %v598
    %849 = vmatpush.bf16.msra.mxu0 %v591
    %850 = vmatmul.bf16.gmra.mxu0 %v234
    %v851 = vpop.f32.mrf.mxu0
    %v852 = vadd.f32 %v215, %v851
    %v853 = vpop.f32.mrf.mxu0
    %v854 = vadd.f32 %v215, %v853
    %855 = vdwg.mxu0
    %856 = vmatpush.bf16.msra.mxu0 %v696
    %857 = vmatpush.bf16.msra.mxu0 %v689
    %858 = vmatpush.bf16.msra.mxu0 %v682
    %859 = vmatpush.bf16.msra.mxu0 %v675
    %860 = vmatpush.bf16.msra.mxu0 %v668
    %861 = vmatpush.bf16.msra.mxu0 %v661
    %862 = vmatpush.bf16.msra.mxu0 %v654
    %863 = vmatpush.bf16.msra.mxu0 %v647
    %864 = vmatmul.bf16.gmra.mxu0 %v235
    %v865 = vpop.f32.mrf.mxu0
    %v866 = vadd.f32 %v852, %v865
    %v867 = vpop.f32.mrf.mxu0
    %v868 = vadd.f32 %v854, %v867
    %869 = vdwg.mxu0
    %870 = vmatpush.bf16.msra.mxu0 %v641
    %871 = vmatpush.bf16.msra.mxu0 %v634
    %872 = vmatpush.bf16.msra.mxu0 %v627
    %873 = vmatpush.bf16.msra.mxu0 %v620
    %874 = vmatpush.bf16.msra.mxu0 %v613
    %875 = vmatpush.bf16.msra.mxu0 %v606
    %876 = vmatpush.bf16.msra.mxu0 %v599
    %877 = vmatpush.bf16.msra.mxu0 %v592
    %878 = vmatmul.bf16.gmra.mxu0 %v234
    %v879 = vpop.f32.mrf.mxu0
    %v880 = vadd.f32 %v216, %v879
    %v881 = vpop.f32.mrf.mxu0
    %v882 = vadd.f32 %v216, %v881
    %883 = vdwg.mxu0
    %884 = vmatpush.bf16.msra.mxu0 %v697
    %885 = vmatpush.bf16.msra.mxu0 %v690
    %886 = vmatpush.bf16.msra.mxu0 %v683
    %887 = vmatpush.bf16.msra.mxu0 %v676
    %888 = vmatpush.bf16.msra.mxu0 %v669
    %889 = vmatpush.bf16.msra.mxu0 %v662
    %890 = vmatpush.bf16.msra.mxu0 %v655
    %891 = vmatpush.bf16.msra.mxu0 %v648
    %892 = vmatmul.bf16.gmra.mxu0 %v235
    %v893 = vpop.f32.mrf.mxu0
    %v894 = vadd.f32 %v880, %v893
    %v895 = vpop.f32.mrf.mxu0
    %v896 = vadd.f32 %v882, %v895
    %897 = vdwg.mxu0
    %898 = vmatpush.bf16.msra.mxu0 %v642
    %899 = vmatpush.bf16.msra.mxu0 %v635
    %900 = vmatpush.bf16.msra.mxu0 %v628
    %901 = vmatpush.bf16.msra.mxu0 %v621
    %902 = vmatpush.bf16.msra.mxu0 %v614
    %903 = vmatpush.bf16.msra.mxu0 %v607
    %904 = vmatpush.bf16.msra.mxu0 %v600
    %905 = vmatpush.bf16.msra.mxu0 %v593
    %906 = vmatmul.bf16.gmra.mxu0 %v234
    %v907 = vpop.f32.mrf.mxu0
    %v908 = vadd.f32 %v217, %v907
    %v909 = vpop.f32.mrf.mxu0
    %v910 = vadd.f32 %v217, %v909
    %911 = vdwg.mxu0
    %912 = vmatpush.bf16.msra.mxu0 %v698
    %913 = vmatpush.bf16.msra.mxu0 %v691
    %914 = vmatpush.bf16.msra.mxu0 %v684
    %915 = vmatpush.bf16.msra.mxu0 %v677
    %916 = vmatpush.bf16.msra.mxu0 %v670
    %917 = vmatpush.bf16.msra.mxu0 %v663
    %918 = vmatpush.bf16.msra.mxu0 %v656
    %919 = vmatpush.bf16.msra.mxu0 %v649
    %920 = vmatmul.bf16.gmra.mxu0 %v235
    %v921 = vpop.f32.mrf.mxu0
    %v922 = vadd.f32 %v908, %v921
    %v923 = vpop.f32.mrf.mxu0
    %v924 = vadd.f32 %v910, %v923
    %925 = vdwg.mxu0
    %926 = vmatpush.bf16.msra.mxu0 %v643
    %927 = vmatpush.bf16.msra.mxu0 %v636
    %928 = vmatpush.bf16.msra.mxu0 %v629
    %929 = vmatpush.bf16.msra.mxu0 %v622
    %930 = vmatpush.bf16.msra.mxu0 %v615
    %931 = vmatpush.bf16.msra.mxu0 %v608
    %932 = vmatpush.bf16.msra.mxu0 %v601
    %933 = vmatpush.bf16.msra.mxu0 %v594
    %934 = vmatmul.bf16.gmra.mxu0 %v234
    %v935 = vpop.f32.mrf.mxu0
    %v936 = vadd.f32 %v218, %v935
    %v937 = vpop.f32.mrf.mxu0
    %v938 = vadd.f32 %v218, %v937
    %939 = vdwg.mxu0
    %940 = vmatpush.bf16.msra.mxu0 %v699
    %941 = vmatpush.bf16.msra.mxu0 %v692
    %942 = vmatpush.bf16.msra.mxu0 %v685
    %943 = vmatpush.bf16.msra.mxu0 %v678
    %944 = vmatpush.bf16.msra.mxu0 %v671
    %945 = vmatpush.bf16.msra.mxu0 %v664
    %946 = vmatpush.bf16.msra.mxu0 %v657
    %947 = vmatpush.bf16.msra.mxu0 %v650
    %948 = vmatmul.bf16.gmra.mxu0 %v235
    %v949 = vpop.f32.mrf.mxu0
    %v950 = vadd.f32 %v936, %v949
    %v951 = vpop.f32.mrf.mxu0
    %v952 = vadd.f32 %v938, %v951
    %953 = vdwg.mxu0
    %954 = vmatpush.bf16.msra.mxu0 %v644
    %955 = vmatpush.bf16.msra.mxu0 %v637
    %956 = vmatpush.bf16.msra.mxu0 %v630
    %957 = vmatpush.bf16.msra.mxu0 %v623
    %958 = vmatpush.bf16.msra.mxu0 %v616
    %959 = vmatpush.bf16.msra.mxu0 %v609
    %960 = vmatpush.bf16.msra.mxu0 %v602
    %961 = vmatpush.bf16.msra.mxu0 %v595
    %962 = vmatmul.bf16.gmra.mxu0 %v234
    %v963 = vpop.f32.mrf.mxu0
    %v964 = vadd.f32 %v219, %v963
    %v965 = vpop.f32.mrf.mxu0
    %v966 = vadd.f32 %v219, %v965
    %967 = vdwg.mxu0
    %968 = vmatpush.bf16.msra.mxu0 %v700
    %969 = vmatpush.bf16.msra.mxu0 %v693
    %970 = vmatpush.bf16.msra.mxu0 %v686
    %971 = vmatpush.bf16.msra.mxu0 %v679
    %972 = vmatpush.bf16.msra.mxu0 %v672
    %973 = vmatpush.bf16.msra.mxu0 %v665
    %974 = vmatpush.bf16.msra.mxu0 %v658
    %975 = vmatpush.bf16.msra.mxu0 %v651
    %976 = vmatmul.bf16.gmra.mxu0 %v235
    %v977 = vpop.f32.mrf.mxu0
    %v978 = vadd.f32 %v964, %v977
    %v979 = vpop.f32.mrf.mxu0
    %v980 = vadd.f32 %v966, %v979
    %981 = vdwg.mxu0
    %982 = vmatpush.bf16.msra.mxu0 %v645
    %983 = vmatpush.bf16.msra.mxu0 %v638
    %984 = vmatpush.bf16.msra.mxu0 %v631
    %985 = vmatpush.bf16.msra.mxu0 %v624
    %986 = vmatpush.bf16.msra.mxu0 %v617
    %987 = vmatpush.bf16.msra.mxu0 %v610
    %988 = vmatpush.bf16.msra.mxu0 %v603
    %989 = vmatpush.bf16.msra.mxu0 %v596
    %990 = vmatmul.bf16.gmra.mxu0 %v234
    %v991 = vpop.f32.mrf.mxu0
    %v992 = vadd.f32 %v220, %v991
    %v993 = vpop.f32.mrf.mxu0
    %v994 = vadd.f32 %v220, %v993
    %995 = vdwg.mxu0
    %996 = vmatpush.bf16.msra.mxu0 %v701
    %997 = vmatpush.bf16.msra.mxu0 %v694
    %998 = vmatpush.bf16.msra.mxu0 %v687
    %999 = vmatpush.bf16.msra.mxu0 %v680
    %1000 = vmatpush.bf16.msra.mxu0 %v673
    %1001 = vmatpush.bf16.msra.mxu0 %v666
    %1002 = vmatpush.bf16.msra.mxu0 %v659
    %1003 = vmatpush.bf16.msra.mxu0 %v652
    %1004 = vmatmul.bf16.gmra.mxu0 %v235
    %v1005 = vpop.f32.mrf.mxu0
    %v1006 = vadd.f32 %v992, %v1005
    %v1007 = vpop.f32.mrf.mxu0
    %v1008 = vadd.f32 %v994, %v1007
    %1009 = vdwg.mxu0
    %v1010 = vmul.f32 %v838, 0.5
    %v1011 = vmul.f32 %v866, 0.5
    %v1012 = vmul.f32 %v894, 0.5
    %v1013 = vmul.f32 %v922, 0.5
    %v1014 = vmul.f32 %v950, 0.5
    %v1015 = vmul.f32 %v978, 0.5
    %v1016 = vmul.f32 %v1006, 0.5
    %v1017 = vmul.f32 %v840, 0.5
    %v1018 = vmul.f32 %v868, 0.5
    %v1019 = vmul.f32 %v896, 0.5
    %v1020 = vmul.f32 %v924, 0.5
    %v1021 = vmul.f32 %v952, 0.5
    %v1022 = vmul.f32 %v980, 0.5
    %v1023 = vmul.f32 %v1008, 0.5
    %v1024 = vmul.f32 %v838, 0.70710677
    %v1025 = vmul.f32 %v866, 0.70710677
    %v1026 = vmul.f32 %v894, 0.70710677
    %v1027 = vmul.f32 %v922, 0.70710677
    %v1028 = vmul.f32 %v950, 0.70710677
    %v1029 = vmul.f32 %v978, 0.70710677
    %v1030 = vmul.f32 %v1006, 0.70710677
    %v1031 = vmul.f32 %v840, 0.70710677
    %v1032 = vmul.f32 %v868, 0.70710677
    %v1033 = vmul.f32 %v896, 0.70710677
    %v1034 = vmul.f32 %v924, 0.70710677
    %v1035 = vmul.f32 %v952, 0.70710677
    %v1036 = vmul.f32 %v980, 0.70710677
    %v1037 = vmul.f32 %v1008, 0.70710677
    %v1038 = vmul.f32 %v1024, %v1024
    %v1039 = vmin.f32 16.0, %v1038
    %v1040 = vmul.f32 %v1039, 2.1237322e-06
    %v1041 = vadd.f32 %v1040, 0.00028619796
    %v1042 = vmul.f32 %v1039, %v1041
    %v1043 = vadd.f32 %v1042, 0.0036580483
    %v1044 = vmul.f32 %v1039, %v1043
    %v1045 = vadd.f32 %v1044, 0.05243302
    %v1046 = vmul.f32 %v1039, %v1045
    %v1047 = vadd.f32 %v1046, 0.18741608
    %v1048 = vmul.f32 %v1039, %v1047
    %v1049 = vadd.f32 %v1048, 1.1283791
    %v1050 = vmul.f32 %v1024, %v1049
    %v1051 = vmul.f32 %v1039, 3.8918573e-05
    %v1052 = vadd.f32 %v1051, 0.001143296
    %v1053 = vmul.f32 %v1039, %v1052
    %v1054 = vadd.f32 %v1053, 0.014752088
    %v1055 = vmul.f32 %v1039, %v1054
    %v1056 = vadd.f32 %v1055, 0.112945676
    %v1057 = vmul.f32 %v1039, %v1056
    %v1058 = vadd.f32 %v1057, 0.4994258
    %v1059 = vmul.f32 %v1039, %v1058
    %v1060 = vadd.f32 %v1059, 1.0
    %v1061 = vrcp.pop %v1060
    %v1062 = vmul.f32 %v1060, %v1061
    %v1063 = vsub.f32 1.0, %v1062
    %v1064 = vmul.f32 %v1061, %v1063
    %v1065 = vadd.f32 %v1061, %v1064
    %vm1066 = vweird.f32 %v1060
    %vm1067 = vweird.f32 %v1061
    %vm1068 = vmor %vm1066, %vm1067
    %v1069 = vsel %vm1068, %v1061, %v1065
    %v1070 = vand.u32 2147483647, %v1060
    %vm1071 = vcmp.eq.f32.partialorder %v1070, 8.507059e+37
    %v1072 = vand.u32 %v1060, 2147483648
    %v1073 = vor.u32 1.1754944e-38, %v1072
    %v1074 = vsel %vm1071, %v1073, %v1069
    %v1075 = vmul.f32 %v1050, %v1074
    %v1076 = vmin.f32 %v1075, 1.0
    %v1077 = vmax.f32 %v1076, -1.0
    %v1078 = vmul.f32 %v1025, %v1025
    %v1079 = vmin.f32 16.0, %v1078
    %v1080 = vmul.f32 %v1079, 2.1237322e-06
    %v1081 = vadd.f32 %v1080, 0.00028619796
    %v1082 = vmul.f32 %v1079, %v1081
    %v1083 = vadd.f32 %v1082, 0.0036580483
    %v1084 = vmul.f32 %v1079, %v1083
    %v1085 = vadd.f32 %v1084, 0.05243302
    %v1086 = vmul.f32 %v1079, %v1085
    %v1087 = vadd.f32 %v1086, 0.18741608
    %v1088 = vmul.f32 %v1079, %v1087
    %v1089 = vadd.f32 %v1088, 1.1283791
    %v1090 = vmul.f32 %v1025, %v1089
    %v1091 = vmul.f32 %v1079, 3.8918573e-05
    %v1092 = vadd.f32 %v1091, 0.001143296
    %v1093 = vmul.f32 %v1079, %v1092
    %v1094 = vadd.f32 %v1093, 0.014752088
    %v1095 = vmul.f32 %v1079, %v1094
    %v1096 = vadd.f32 %v1095, 0.112945676
    %v1097 = vmul.f32 %v1079, %v1096
    %v1098 = vadd.f32 %v1097, 0.4994258
    %v1099 = vmul.f32 %v1079, %v1098
    %v1100 = vadd.f32 %v1099, 1.0
    %v1101 = vrcp.pop %v1100
    %v1102 = vmul.f32 %v1100, %v1101
    %v1103 = vsub.f32 1.0, %v1102
    %v1104 = vmul.f32 %v1101, %v1103
    %v1105 = vadd.f32 %v1101, %v1104
    %vm1106 = vweird.f32 %v1100
    %vm1107 = vweird.f32 %v1101
    %vm1108 = vmor %vm1106, %vm1107
    %v1109 = vsel %vm1108, %v1101, %v1105
    %v1110 = vand.u32 2147483647, %v1100
    %vm1111 = vcmp.eq.f32.partialorder %v1110, 8.507059e+37
    %v1112 = vand.u32 %v1100, 2147483648
    %v1113 = vor.u32 1.1754944e-38, %v1112
    %v1114 = vsel %vm1111, %v1113, %v1109
    %v1115 = vmul.f32 %v1090, %v1114
    %v1116 = vmin.f32 %v1115, 1.0
    %v1117 = vmax.f32 %v1116, -1.0
    %v1118 = vmul.f32 %v1026, %v1026
    %v1119 = vmin.f32 16.0, %v1118
    %v1120 = vmul.f32 %v1119, 2.1237322e-06
    %v1121 = vadd.f32 %v1120, 0.00028619796
    %v1122 = vmul.f32 %v1119, %v1121
    %v1123 = vadd.f32 %v1122, 0.0036580483
    %v1124 = vmul.f32 %v1119, %v1123
    %v1125 = vadd.f32 %v1124, 0.05243302
    %v1126 = vmul.f32 %v1119, %v1125
    %v1127 = vadd.f32 %v1126, 0.18741608
    %v1128 = vmul.f32 %v1119, %v1127
    %v1129 = vadd.f32 %v1128, 1.1283791
    %v1130 = vmul.f32 %v1026, %v1129
    %v1131 = vmul.f32 %v1119, 3.8918573e-05
    %v1132 = vadd.f32 %v1131, 0.001143296
    %v1133 = vmul.f32 %v1119, %v1132
    %v1134 = vadd.f32 %v1133, 0.014752088
    %v1135 = vmul.f32 %v1119, %v1134
    %v1136 = vadd.f32 %v1135, 0.112945676
    %v1137 = vmul.f32 %v1119, %v1136
    %v1138 = vadd.f32 %v1137, 0.4994258
    %v1139 = vmul.f32 %v1119, %v1138
    %v1140 = vadd.f32 %v1139, 1.0
    %v1141 = vrcp.pop %v1140
    %v1142 = vmul.f32 %v1140, %v1141
    %v1143 = vsub.f32 1.0, %v1142
    %v1144 = vmul.f32 %v1141, %v1143
    %v1145 = vadd.f32 %v1141, %v1144
    %vm1146 = vweird.f32 %v1140
    %vm1147 = vweird.f32 %v1141
    %vm1148 = vmor %vm1146, %vm1147
    %v1149 = vsel %vm1148, %v1141, %v1145
    %v1150 = vand.u32 2147483647, %v1140
    %vm1151 = vcmp.eq.f32.partialorder %v1150, 8.507059e+37
    %v1152 = vand.u32 %v1140, 2147483648
    %v1153 = vor.u32 1.1754944e-38, %v1152
    %v1154 = vsel %vm1151, %v1153, %v1149
    %v1155 = vmul.f32 %v1130, %v1154
    %v1156 = vmin.f32 %v1155, 1.0
    %v1157 = vmax.f32 %v1156, -1.0
    %v1158 = vmul.f32 %v1027, %v1027
    %v1159 = vmin.f32 16.0, %v1158
    %v1160 = vmul.f32 %v1159, 2.1237322e-06
    %v1161 = vadd.f32 %v1160, 0.00028619796
    %v1162 = vmul.f32 %v1159, %v1161
    %v1163 = vadd.f32 %v1162, 0.0036580483
    %v1164 = vmul.f32 %v1159, %v1163
    %v1165 = vadd.f32 %v1164, 0.05243302
    %v1166 = vmul.f32 %v1159, %v1165
    %v1167 = vadd.f32 %v1166, 0.18741608
    %v1168 = vmul.f32 %v1159, %v1167
    %v1169 = vadd.f32 %v1168, 1.1283791
    %v1170 = vmul.f32 %v1027, %v1169
    %v1171 = vmul.f32 %v1159, 3.8918573e-05
    %v1172 = vadd.f32 %v1171, 0.001143296
    %v1173 = vmul.f32 %v1159, %v1172
    %v1174 = vadd.f32 %v1173, 0.014752088
    %v1175 = vmul.f32 %v1159, %v1174
    %v1176 = vadd.f32 %v1175, 0.112945676
    %v1177 = vmul.f32 %v1159, %v1176
    %v1178 = vadd.f32 %v1177, 0.4994258
    %v1179 = vmul.f32 %v1159, %v1178
    %v1180 = vadd.f32 %v1179, 1.0
    %v1181 = vrcp.pop %v1180
    %v1182 = vmul.f32 %v1180, %v1181
    %v1183 = vsub.f32 1.0, %v1182
    %v1184 = vmul.f32 %v1181, %v1183
    %v1185 = vadd.f32 %v1181, %v1184
    %vm1186 = vweird.f32 %v1180
    %vm1187 = vweird.f32 %v1181
    %vm1188 = vmor %vm1186, %vm1187
    %v1189 = vsel %vm1188, %v1181, %v1185
    %v1190 = vand.u32 2147483647, %v1180
    %vm1191 = vcmp.eq.f32.partialorder %v1190, 8.507059e+37
    %v1192 = vand.u32 %v1180, 2147483648
    %v1193 = vor.u32 1.1754944e-38, %v1192
    %v1194 = vsel %vm1191, %v1193, %v1189
    %v1195 = vmul.f32 %v1170, %v1194
    %v1196 = vmin.f32 %v1195, 1.0
    %v1197 = vmax.f32 %v1196, -1.0
    %v1198 = vmul.f32 %v1028, %v1028
    %v1199 = vmin.f32 16.0, %v1198
    %v1200 = vmul.f32 %v1199, 2.1237322e-06
    %v1201 = vadd.f32 %v1200, 0.00028619796
    %v1202 = vmul.f32 %v1199, %v1201
    %v1203 = vadd.f32 %v1202, 0.0036580483
    %v1204 = vmul.f32 %v1199, %v1203
    %v1205 = vadd.f32 %v1204, 0.05243302
    %v1206 = vmul.f32 %v1199, %v1205
    %v1207 = vadd.f32 %v1206, 0.18741608
    %v1208 = vmul.f32 %v1199, %v1207
    %v1209 = vadd.f32 %v1208, 1.1283791
    %v1210 = vmul.f32 %v1028, %v1209
    %v1211 = vmul.f32 %v1199, 3.8918573e-05
    %v1212 = vadd.f32 %v1211, 0.001143296
    %v1213 = vmul.f32 %v1199, %v1212
    %v1214 = vadd.f32 %v1213, 0.014752088
    %v1215 = vmul.f32 %v1199, %v1214
    %v1216 = vadd.f32 %v1215, 0.112945676
    %v1217 = vmul.f32 %v1199, %v1216
    %v1218 = vadd.f32 %v1217, 0.4994258
    %v1219 = vmul.f32 %v1199, %v1218
    %v1220 = vadd.f32 %v1219, 1.0
    %v1221 = vrcp.pop %v1220
    %v1222 = vmul.f32 %v1220, %v1221
    %v1223 = vsub.f32 1.0, %v1222
    %v1224 = vmul.f32 %v1221, %v1223
    %v1225 = vadd.f32 %v1221, %v1224
    %vm1226 = vweird.f32 %v1220
    %vm1227 = vweird.f32 %v1221
    %vm1228 = vmor %vm1226, %vm1227
    %v1229 = vsel %vm1228, %v1221, %v1225
    %v1230 = vand.u32 2147483647, %v1220
    %vm1231 = vcmp.eq.f32.partialorder %v1230, 8.507059e+37
    %v1232 = vand.u32 %v1220, 2147483648
    %v1233 = vor.u32 1.1754944e-38, %v1232
    %v1234 = vsel %vm1231, %v1233, %v1229
    %v1235 = vmul.f32 %v1210, %v1234
    %v1236 = vmin.f32 %v1235, 1.0
    %v1237 = vmax.f32 %v1236, -1.0
    %v1238 = vmul.f32 %v1029, %v1029
    %v1239 = vmin.f32 16.0, %v1238
    %v1240 = vmul.f32 %v1239, 2.1237322e-06
    %v1241 = vadd.f32 %v1240, 0.00028619796
    %v1242 = vmul.f32 %v1239, %v1241
    %v1243 = vadd.f32 %v1242, 0.0036580483
    %v1244 = vmul.f32 %v1239, %v1243
    %v1245 = vadd.f32 %v1244, 0.05243302
    %v1246 = vmul.f32 %v1239, %v1245
    %v1247 = vadd.f32 %v1246, 0.18741608
    %v1248 = vmul.f32 %v1239, %v1247
    %v1249 = vadd.f32 %v1248, 1.1283791
    %v1250 = vmul.f32 %v1029, %v1249
    %v1251 = vmul.f32 %v1239, 3.8918573e-05
    %v1252 = vadd.f32 %v1251, 0.001143296
    %v1253 = vmul.f32 %v1239, %v1252
    %v1254 = vadd.f32 %v1253, 0.014752088
    %v1255 = vmul.f32 %v1239, %v1254
    %v1256 = vadd.f32 %v1255, 0.112945676
    %v1257 = vmul.f32 %v1239, %v1256
    %v1258 = vadd.f32 %v1257, 0.4994258
    %v1259 = vmul.f32 %v1239, %v1258
    %v1260 = vadd.f32 %v1259, 1.0
    %v1261 = vrcp.pop %v1260
    %v1262 = vmul.f32 %v1260, %v1261
    %v1263 = vsub.f32 1.0, %v1262
    %v1264 = vmul.f32 %v1261, %v1263
    %v1265 = vadd.f32 %v1261, %v1264
    %vm1266 = vweird.f32 %v1260
    %vm1267 = vweird.f32 %v1261
    %vm1268 = vmor %vm1266, %vm1267
    %v1269 = vsel %vm1268, %v1261, %v1265
    %v1270 = vand.u32 2147483647, %v1260
    %vm1271 = vcmp.eq.f32.partialorder %v1270, 8.507059e+37
    %v1272 = vand.u32 %v1260, 2147483648
    %v1273 = vor.u32 1.1754944e-38, %v1272
    %v1274 = vsel %vm1271, %v1273, %v1269
    %v1275 = vmul.f32 %v1250, %v1274
    %v1276 = vmin.f32 %v1275, 1.0
    %v1277 = vmax.f32 %v1276, -1.0
    %v1278 = vmul.f32 %v1030, %v1030
    %v1279 = vmin.f32 16.0, %v1278
    %v1280 = vmul.f32 %v1279, 2.1237322e-06
    %v1281 = vadd.f32 %v1280, 0.00028619796
    %v1282 = vmul.f32 %v1279, %v1281
    %v1283 = vadd.f32 %v1282, 0.0036580483
    %v1284 = vmul.f32 %v1279, %v1283
    %v1285 = vadd.f32 %v1284, 0.05243302
    %v1286 = vmul.f32 %v1279, %v1285
    %v1287 = vadd.f32 %v1286, 0.18741608
    %v1288 = vmul.f32 %v1279, %v1287
    %v1289 = vadd.f32 %v1288, 1.1283791
    %v1290 = vmul.f32 %v1030, %v1289
    %v1291 = vmul.f32 %v1279, 3.8918573e-05
    %v1292 = vadd.f32 %v1291, 0.001143296
    %v1293 = vmul.f32 %v1279, %v1292
    %v1294 = vadd.f32 %v1293, 0.014752088
    %v1295 = vmul.f32 %v1279, %v1294
    %v1296 = vadd.f32 %v1295, 0.112945676
    %v1297 = vmul.f32 %v1279, %v1296
    %v1298 = vadd.f32 %v1297, 0.4994258
    %v1299 = vmul.f32 %v1279, %v1298
    %v1300 = vadd.f32 %v1299, 1.0
    %v1301 = vrcp.pop %v1300
    %v1302 = vmul.f32 %v1300, %v1301
    %v1303 = vsub.f32 1.0, %v1302
    %v1304 = vmul.f32 %v1301, %v1303
    %v1305 = vadd.f32 %v1301, %v1304
    %vm1306 = vweird.f32 %v1300
    %vm1307 = vweird.f32 %v1301
    %vm1308 = vmor %vm1306, %vm1307
    %v1309 = vsel %vm1308, %v1301, %v1305
    %v1310 = vand.u32 2147483647, %v1300
    %vm1311 = vcmp.eq.f32.partialorder %v1310, 8.507059e+37
    %v1312 = vand.u32 %v1300, 2147483648
    %v1313 = vor.u32 1.1754944e-38, %v1312
    %v1314 = vsel %vm1311, %v1313, %v1309
    %v1315 = vmul.f32 %v1290, %v1314
    %v1316 = vmin.f32 %v1315, 1.0
    %v1317 = vmax.f32 %v1316, -1.0
    %v1318 = vmul.f32 %v1031, %v1031
    %v1319 = vmin.f32 16.0, %v1318
    %v1320 = vmul.f32 %v1319, 2.1237322e-06
    %v1321 = vadd.f32 %v1320, 0.00028619796
    %v1322 = vmul.f32 %v1319, %v1321
    %v1323 = vadd.f32 %v1322, 0.0036580483
    %v1324 = vmul.f32 %v1319, %v1323
    %v1325 = vadd.f32 %v1324, 0.05243302
    %v1326 = vmul.f32 %v1319, %v1325
    %v1327 = vadd.f32 %v1326, 0.18741608
    %v1328 = vmul.f32 %v1319, %v1327
    %v1329 = vadd.f32 %v1328, 1.1283791
    %v1330 = vmul.f32 %v1031, %v1329
    %v1331 = vmul.f32 %v1319, 3.8918573e-05
    %v1332 = vadd.f32 %v1331, 0.001143296
    %v1333 = vmul.f32 %v1319, %v1332
    %v1334 = vadd.f32 %v1333, 0.014752088
    %v1335 = vmul.f32 %v1319, %v1334
    %v1336 = vadd.f32 %v1335, 0.112945676
    %v1337 = vmul.f32 %v1319, %v1336
    %v1338 = vadd.f32 %v1337, 0.4994258
    %v1339 = vmul.f32 %v1319, %v1338
    %v1340 = vadd.f32 %v1339, 1.0
    %v1341 = vrcp.pop %v1340
    %v1342 = vmul.f32 %v1340, %v1341
    %v1343 = vsub.f32 1.0, %v1342
    %v1344 = vmul.f32 %v1341, %v1343
    %v1345 = vadd.f32 %v1341, %v1344
    %vm1346 = vweird.f32 %v1340
    %vm1347 = vweird.f32 %v1341
    %vm1348 = vmor %vm1346, %vm1347
    %v1349 = vsel %vm1348, %v1341, %v1345
    %v1350 = vand.u32 2147483647, %v1340
    %vm1351 = vcmp.eq.f32.partialorder %v1350, 8.507059e+37
    %v1352 = vand.u32 %v1340, 2147483648
    %v1353 = vor.u32 1.1754944e-38, %v1352
    %v1354 = vsel %vm1351, %v1353, %v1349
    %v1355 = vmul.f32 %v1330, %v1354
    %v1356 = vmin.f32 %v1355, 1.0
    %v1357 = vmax.f32 %v1356, -1.0
    %v1358 = vmul.f32 %v1032, %v1032
    %v1359 = vmin.f32 16.0, %v1358
    %v1360 = vmul.f32 %v1359, 2.1237322e-06
    %v1361 = vadd.f32 %v1360, 0.00028619796
    %v1362 = vmul.f32 %v1359, %v1361
    %v1363 = vadd.f32 %v1362, 0.0036580483
    %v1364 = vmul.f32 %v1359, %v1363
    %v1365 = vadd.f32 %v1364, 0.05243302
    %v1366 = vmul.f32 %v1359, %v1365
    %v1367 = vadd.f32 %v1366, 0.18741608
    %v1368 = vmul.f32 %v1359, %v1367
    %v1369 = vadd.f32 %v1368, 1.1283791
    %v1370 = vmul.f32 %v1032, %v1369
    %v1371 = vmul.f32 %v1359, 3.8918573e-05
    %v1372 = vadd.f32 %v1371, 0.001143296
    %v1373 = vmul.f32 %v1359, %v1372
    %v1374 = vadd.f32 %v1373, 0.014752088
    %v1375 = vmul.f32 %v1359, %v1374
    %v1376 = vadd.f32 %v1375, 0.112945676
    %v1377 = vmul.f32 %v1359, %v1376
    %v1378 = vadd.f32 %v1377, 0.4994258
    %v1379 = vmul.f32 %v1359, %v1378
    %v1380 = vadd.f32 %v1379, 1.0
    %v1381 = vrcp.pop %v1380
    %v1382 = vmul.f32 %v1380, %v1381
    %v1383 = vsub.f32 1.0, %v1382
    %v1384 = vmul.f32 %v1381, %v1383
    %v1385 = vadd.f32 %v1381, %v1384
    %vm1386 = vweird.f32 %v1380
    %vm1387 = vweird.f32 %v1381
    %vm1388 = vmor %vm1386, %vm1387
    %v1389 = vsel %vm1388, %v1381, %v1385
    %v1390 = vand.u32 2147483647, %v1380
    %vm1391 = vcmp.eq.f32.partialorder %v1390, 8.507059e+37
    %v1392 = vand.u32 %v1380, 2147483648
    %v1393 = vor.u32 1.1754944e-38, %v1392
    %v1394 = vsel %vm1391, %v1393, %v1389
    %v1395 = vmul.f32 %v1370, %v1394
    %v1396 = vmin.f32 %v1395, 1.0
    %v1397 = vmax.f32 %v1396, -1.0
    %v1398 = vmul.f32 %v1033, %v1033
    %v1399 = vmin.f32 16.0, %v1398
    %v1400 = vmul.f32 %v1399, 2.1237322e-06
    %v1401 = vadd.f32 %v1400, 0.00028619796
    %v1402 = vmul.f32 %v1399, %v1401
    %v1403 = vadd.f32 %v1402, 0.0036580483
    %v1404 = vmul.f32 %v1399, %v1403
    %v1405 = vadd.f32 %v1404, 0.05243302
    %v1406 = vmul.f32 %v1399, %v1405
    %v1407 = vadd.f32 %v1406, 0.18741608
    %v1408 = vmul.f32 %v1399, %v1407
    %v1409 = vadd.f32 %v1408, 1.1283791
    %v1410 = vmul.f32 %v1033, %v1409
    %v1411 = vmul.f32 %v1399, 3.8918573e-05
    %v1412 = vadd.f32 %v1411, 0.001143296
    %v1413 = vmul.f32 %v1399, %v1412
    %v1414 = vadd.f32 %v1413, 0.014752088
    %v1415 = vmul.f32 %v1399, %v1414
    %v1416 = vadd.f32 %v1415, 0.112945676
    %v1417 = vmul.f32 %v1399, %v1416
    %v1418 = vadd.f32 %v1417, 0.4994258
    %v1419 = vmul.f32 %v1399, %v1418
    %v1420 = vadd.f32 %v1419, 1.0
    %v1421 = vrcp.pop %v1420
    %v1422 = vmul.f32 %v1420, %v1421
    %v1423 = vsub.f32 1.0, %v1422
    %v1424 = vmul.f32 %v1421, %v1423
    %v1425 = vadd.f32 %v1421, %v1424
    %vm1426 = vweird.f32 %v1420
    %vm1427 = vweird.f32 %v1421
    %vm1428 = vmor %vm1426, %vm1427
    %v1429 = vsel %vm1428, %v1421, %v1425
    %v1430 = vand.u32 2147483647, %v1420
    %vm1431 = vcmp.eq.f32.partialorder %v1430, 8.507059e+37
    %v1432 = vand.u32 %v1420, 2147483648
    %v1433 = vor.u32 1.1754944e-38, %v1432
    %v1434 = vsel %vm1431, %v1433, %v1429
    %v1435 = vmul.f32 %v1410, %v1434
    %v1436 = vmin.f32 %v1435, 1.0
    %v1437 = vmax.f32 %v1436, -1.0
    %v1438 = vmul.f32 %v1034, %v1034
    %v1439 = vmin.f32 16.0, %v1438
    %v1440 = vmul.f32 %v1439, 2.1237322e-06
    %v1441 = vadd.f32 %v1440, 0.00028619796
    %v1442 = vmul.f32 %v1439, %v1441
    %v1443 = vadd.f32 %v1442, 0.0036580483
    %v1444 = vmul.f32 %v1439, %v1443
    %v1445 = vadd.f32 %v1444, 0.05243302
    %v1446 = vmul.f32 %v1439, %v1445
    %v1447 = vadd.f32 %v1446, 0.18741608
    %v1448 = vmul.f32 %v1439, %v1447
    %v1449 = vadd.f32 %v1448, 1.1283791
    %v1450 = vmul.f32 %v1034, %v1449
    %v1451 = vmul.f32 %v1439, 3.8918573e-05
    %v1452 = vadd.f32 %v1451, 0.001143296
    %v1453 = vmul.f32 %v1439, %v1452
    %v1454 = vadd.f32 %v1453, 0.014752088
    %v1455 = vmul.f32 %v1439, %v1454
    %v1456 = vadd.f32 %v1455, 0.112945676
    %v1457 = vmul.f32 %v1439, %v1456
    %v1458 = vadd.f32 %v1457, 0.4994258
    %v1459 = vmul.f32 %v1439, %v1458
    %v1460 = vadd.f32 %v1459, 1.0
    %v1461 = vrcp.pop %v1460
    %v1462 = vmul.f32 %v1460, %v1461
    %v1463 = vsub.f32 1.0, %v1462
    %v1464 = vmul.f32 %v1461, %v1463
    %v1465 = vadd.f32 %v1461, %v1464
    %vm1466 = vweird.f32 %v1460
    %vm1467 = vweird.f32 %v1461
    %vm1468 = vmor %vm1466, %vm1467
    %v1469 = vsel %vm1468, %v1461, %v1465
    %v1470 = vand.u32 2147483647, %v1460
    %vm1471 = vcmp.eq.f32.partialorder %v1470, 8.507059e+37
    %v1472 = vand.u32 %v1460, 2147483648
    %v1473 = vor.u32 1.1754944e-38, %v1472
    %v1474 = vsel %vm1471, %v1473, %v1469
    %v1475 = vmul.f32 %v1450, %v1474
    %v1476 = vmin.f32 %v1475, 1.0
    %v1477 = vmax.f32 %v1476, -1.0
    %v1478 = vmul.f32 %v1035, %v1035
    %v1479 = vmin.f32 16.0, %v1478
    %v1480 = vmul.f32 %v1479, 2.1237322e-06
    %v1481 = vadd.f32 %v1480, 0.00028619796
    %v1482 = vmul.f32 %v1479, %v1481
    %v1483 = vadd.f32 %v1482, 0.0036580483
    %v1484 = vmul.f32 %v1479, %v1483
    %v1485 = vadd.f32 %v1484, 0.05243302
    %v1486 = vmul.f32 %v1479, %v1485
    %v1487 = vadd.f32 %v1486, 0.18741608
    %v1488 = vmul.f32 %v1479, %v1487
    %v1489 = vadd.f32 %v1488, 1.1283791
    %v1490 = vmul.f32 %v1035, %v1489
    %v1491 = vmul.f32 %v1479, 3.8918573e-05
    %v1492 = vadd.f32 %v1491, 0.001143296
    %v1493 = vmul.f32 %v1479, %v1492
    %v1494 = vadd.f32 %v1493, 0.014752088
    %v1495 = vmul.f32 %v1479, %v1494
    %v1496 = vadd.f32 %v1495, 0.112945676
    %v1497 = vmul.f32 %v1479, %v1496
    %v1498 = vadd.f32 %v1497, 0.4994258
    %v1499 = vmul.f32 %v1479, %v1498
    %v1500 = vadd.f32 %v1499, 1.0
    %v1501 = vrcp.pop %v1500
    %v1502 = vmul.f32 %v1500, %v1501
    %v1503 = vsub.f32 1.0, %v1502
    %v1504 = vmul.f32 %v1501, %v1503
    %v1505 = vadd.f32 %v1501, %v1504
    %vm1506 = vweird.f32 %v1500
    %vm1507 = vweird.f32 %v1501
    %vm1508 = vmor %vm1506, %vm1507
    %v1509 = vsel %vm1508, %v1501, %v1505
    %v1510 = vand.u32 2147483647, %v1500
    %vm1511 = vcmp.eq.f32.partialorder %v1510, 8.507059e+37
    %v1512 = vand.u32 %v1500, 2147483648
    %v1513 = vor.u32 1.1754944e-38, %v1512
    %v1514 = vsel %vm1511, %v1513, %v1509
    %v1515 = vmul.f32 %v1490, %v1514
    %v1516 = vmin.f32 %v1515, 1.0
    %v1517 = vmax.f32 %v1516, -1.0
    %v1518 = vmul.f32 %v1036, %v1036
    %v1519 = vmin.f32 16.0, %v1518
    %v1520 = vmul.f32 %v1519, 2.1237322e-06
    %v1521 = vadd.f32 %v1520, 0.00028619796
    %v1522 = vmul.f32 %v1519, %v1521
    %v1523 = vadd.f32 %v1522, 0.0036580483
    %v1524 = vmul.f32 %v1519, %v1523
    %v1525 = vadd.f32 %v1524, 0.05243302
    %v1526 = vmul.f32 %v1519, %v1525
    %v1527 = vadd.f32 %v1526, 0.18741608
    %v1528 = vmul.f32 %v1519, %v1527
    %v1529 = vadd.f32 %v1528, 1.1283791
    %v1530 = vmul.f32 %v1036, %v1529
    %v1531 = vmul.f32 %v1519, 3.8918573e-05
    %v1532 = vadd.f32 %v1531, 0.001143296
    %v1533 = vmul.f32 %v1519, %v1532
    %v1534 = vadd.f32 %v1533, 0.014752088
    %v1535 = vmul.f32 %v1519, %v1534
    %v1536 = vadd.f32 %v1535, 0.112945676
    %v1537 = vmul.f32 %v1519, %v1536
    %v1538 = vadd.f32 %v1537, 0.4994258
    %v1539 = vmul.f32 %v1519, %v1538
    %v1540 = vadd.f32 %v1539, 1.0
    %v1541 = vrcp.pop %v1540
    %v1542 = vmul.f32 %v1540, %v1541
    %v1543 = vsub.f32 1.0, %v1542
    %v1544 = vmul.f32 %v1541, %v1543
    %v1545 = vadd.f32 %v1541, %v1544
    %vm1546 = vweird.f32 %v1540
    %vm1547 = vweird.f32 %v1541
    %vm1548 = vmor %vm1546, %vm1547
    %v1549 = vsel %vm1548, %v1541, %v1545
    %v1550 = vand.u32 2147483647, %v1540
    %vm1551 = vcmp.eq.f32.partialorder %v1550, 8.507059e+37
    %v1552 = vand.u32 %v1540, 2147483648
    %v1553 = vor.u32 1.1754944e-38, %v1552
    %v1554 = vsel %vm1551, %v1553, %v1549
    %v1555 = vmul.f32 %v1530, %v1554
    %v1556 = vmin.f32 %v1555, 1.0
    %v1557 = vmax.f32 %v1556, -1.0
    %v1558 = vmul.f32 %v1037, %v1037
    %v1559 = vmin.f32 16.0, %v1558
    %v1560 = vmul.f32 %v1559, 2.1237322e-06
    %v1561 = vadd.f32 %v1560, 0.00028619796
    %v1562 = vmul.f32 %v1559, %v1561
    %v1563 = vadd.f32 %v1562, 0.0036580483
    %v1564 = vmul.f32 %v1559, %v1563
    %v1565 = vadd.f32 %v1564, 0.05243302
    %v1566 = vmul.f32 %v1559, %v1565
    %v1567 = vadd.f32 %v1566, 0.18741608
    %v1568 = vmul.f32 %v1559, %v1567
    %v1569 = vadd.f32 %v1568, 1.1283791
    %v1570 = vmul.f32 %v1037, %v1569
    %v1571 = vmul.f32 %v1559, 3.8918573e-05
    %v1572 = vadd.f32 %v1571, 0.001143296
    %v1573 = vmul.f32 %v1559, %v1572
    %v1574 = vadd.f32 %v1573, 0.014752088
    %v1575 = vmul.f32 %v1559, %v1574
    %v1576 = vadd.f32 %v1575, 0.112945676
    %v1577 = vmul.f32 %v1559, %v1576
    %v1578 = vadd.f32 %v1577, 0.4994258
    %v1579 = vmul.f32 %v1559, %v1578
    %v1580 = vadd.f32 %v1579, 1.0
    %v1581 = vrcp.pop %v1580
    %v1582 = vmul.f32 %v1580, %v1581
    %v1583 = vsub.f32 1.0, %v1582
    %v1584 = vmul.f32 %v1581, %v1583
    %v1585 = vadd.f32 %v1581, %v1584
    %vm1586 = vweird.f32 %v1580
    %vm1587 = vweird.f32 %v1581
    %vm1588 = vmor %vm1586, %vm1587
    %v1589 = vsel %vm1588, %v1581, %v1585
    %v1590 = vand.u32 2147483647, %v1580
    %vm1591 = vcmp.eq.f32.partialorder %v1590, 8.507059e+37
    %v1592 = vand.u32 %v1580, 2147483648
    %v1593 = vor.u32 1.1754944e-38, %v1592
    %v1594 = vsel %vm1591, %v1593, %v1589
    %v1595 = vmul.f32 %v1570, %v1594
    %v1596 = vmin.f32 %v1595, 1.0
    %v1597 = vmax.f32 %v1596, -1.0
    %v1598 = vadd.f32 %v1077, 1.0
    %v1599 = vadd.f32 %v1117, 1.0
    %v1600 = vadd.f32 %v1157, 1.0
    %v1601 = vadd.f32 %v1197, 1.0
    %v1602 = vadd.f32 %v1237, 1.0
    %v1603 = vadd.f32 %v1277, 1.0
    %v1604 = vadd.f32 %v1317, 1.0
    %v1605 = vadd.f32 %v1357, 1.0
    %v1606 = vadd.f32 %v1397, 1.0
    %v1607 = vadd.f32 %v1437, 1.0
    %v1608 = vadd.f32 %v1477, 1.0
    %v1609 = vadd.f32 %v1517, 1.0
    %v1610 = vadd.f32 %v1557, 1.0
    %v1611 = vadd.f32 %v1597, 1.0
    %v1612 = vmul.f32 %v1010, %v1598
    %v1613 = vmul.f32 %v1011, %v1599
    %v1614 = vmul.f32 %v1012, %v1600
    %v1615 = vmul.f32 %v1013, %v1601
    %v1616 = vmul.f32 %v1014, %v1602
    %v1617 = vmul.f32 %v1015, %v1603
    %v1618 = vmul.f32 %v1016, %v1604
    %v1619 = vmul.f32 %v1017, %v1605
    %v1620 = vmul.f32 %v1018, %v1606
    %v1621 = vmul.f32 %v1019, %v1607
    %v1622 = vmul.f32 %v1020, %v1608
    %v1623 = vmul.f32 %v1021, %v1609
    %v1624 = vmul.f32 %v1022, %v1610
    %v1625 = vmul.f32 %v1023, %v1611
    %v1626 = vpack.c.bf16 %v1619, %v1612
    %v1627 = vpack.c.bf16 %v1620, %v1613
    %v1628 = vpack.c.bf16 %v1621, %v1614
    %v1629 = vpack.c.bf16 %v1622, %v1615
    %v1630 = vpack.c.bf16 %v1623, %v1616
    %v1631 = vpack.c.bf16 %v1624, %v1617
    %v1632 = vpack.c.bf16 %v1625, %v1618
    %v1633 = vld [vmem:[#allocation8] sm:$0xff]
    %v1634 = vld [vmem:[#allocation8 + $0x8] sm:$0xff]
    %v1635 = vld [vmem:[#allocation8 + $0x10] sm:$0xff]
    %v1636 = vld [vmem:[#allocation8 + $0x18] sm:$0xff]
    %v1637 = vld [vmem:[#allocation8 + $0x20] sm:$0xff]
    %v1638 = vld [vmem:[#allocation8 + $0x28] sm:$0xff]
    %v1639 = vld [vmem:[#allocation8 + $0x30] sm:$0xff]
    %v1640 = vld [vmem:[#allocation8 + $0x38] sm:$0xff]
    %v1641 = vld [vmem:[#allocation8 + $0x40] sm:$0xff]
    %v1642 = vld [vmem:[#allocation8 + $0x48] sm:$0xff]
    %v1643 = vld [vmem:[#allocation8 + $0x50] sm:$0xff]
    %v1644 = vld [vmem:[#allocation8 + $0x58] sm:$0xff]
    %v1645 = vld [vmem:[#allocation8 + $0x60] sm:$0xff]
    %v1646 = vld [vmem:[#allocation8 + $0x68] sm:$0xff]
    %v1647 = vld [vmem:[#allocation8 + $0x70] sm:$0xff]
    %v1648 = vld [vmem:[#allocation8 + $0x78] sm:$0xff]
    %v1649 = vld [vmem:[#allocation8 + $0x80] sm:$0xff]
    %v1650 = vld [vmem:[#allocation8 + $0x88] sm:$0xff]
    %v1651 = vld [vmem:[#allocation8 + $0x90] sm:$0xff]
    %v1652 = vld [vmem:[#allocation8 + $0x98] sm:$0xff]
    %v1653 = vld [vmem:[#allocation8 + $0xa0] sm:$0xff]
    %v1654 = vld [vmem:[#allocation8 + $0xa8] sm:$0xff]
    %v1655 = vld [vmem:[#allocation8 + $0xb0] sm:$0xff]
    %v1656 = vld [vmem:[#allocation8 + $0xb8] sm:$0xff]
    %v1657 = vld [vmem:[#allocation8 + $0xc0] sm:$0xff]
    %v1658 = vld [vmem:[#allocation8 + $0xc8] sm:$0xff]
    %v1659 = vld [vmem:[#allocation8 + $0xd0] sm:$0xff]
    %v1660 = vld [vmem:[#allocation8 + $0xd8] sm:$0xff]
    %v1661 = vld [vmem:[#allocation8 + $0xe0] sm:$0xff]
    %v1662 = vld [vmem:[#allocation8 + $0xe8] sm:$0xff]
    %v1663 = vld [vmem:[#allocation8 + $0xf0] sm:$0xff]
    %v1664 = vld [vmem:[#allocation8 + $0xf8] sm:$0xff]
    %v1665 = vld [vmem:[#allocation8 + $0x100] sm:$0xff]
    %v1666 = vld [vmem:[#allocation8 + $0x108] sm:$0xff]
    %v1667 = vld [vmem:[#allocation8 + $0x110] sm:$0xff]
    %v1668 = vld [vmem:[#allocation8 + $0x118] sm:$0xff]
    %v1669 = vld [vmem:[#allocation8 + $0x120] sm:$0xff]
    %v1670 = vld [vmem:[#allocation8 + $0x128] sm:$0xff]
    %v1671 = vld [vmem:[#allocation8 + $0x130] sm:$0xff]
    %v1672 = vld [vmem:[#allocation8 + $0x138] sm:$0xff]
    %v1673 = vld [vmem:[#allocation8 + $0x140] sm:$0xff]
    %v1674 = vld [vmem:[#allocation8 + $0x148] sm:$0xff]
    %v1675 = vld [vmem:[#allocation8 + $0x150] sm:$0xff]
    %v1676 = vld [vmem:[#allocation8 + $0x158] sm:$0xff]
    %v1677 = vld [vmem:[#allocation8 + $0x160] sm:$0xff]
    %v1678 = vld [vmem:[#allocation8 + $0x168] sm:$0xff]
    %v1679 = vld [vmem:[#allocation8 + $0x170] sm:$0xff]
    %v1680 = vld [vmem:[#allocation8 + $0x178] sm:$0xff]
    %v1681 = vld [vmem:[#allocation8 + $0x180] sm:$0xff]
    %v1682 = vld [vmem:[#allocation8 + $0x188] sm:$0xff]
    %v1683 = vld [vmem:[#allocation8 + $0x190] sm:$0xff]
    %v1684 = vld [vmem:[#allocation8 + $0x198] sm:$0xff]
    %v1685 = vld [vmem:[#allocation8 + $0x1a0] sm:$0xff]
    %v1686 = vld [vmem:[#allocation8 + $0x1a8] sm:$0xff]
    %v1687 = vld [vmem:[#allocation8 + $0x1b0] sm:$0xff]
    %v1688 = vld [vmem:[#allocation8 + $0x1b8] sm:$0xff]
    %v1689 = vld [vmem:[#allocation8 + $0x1c0] sm:$0xff]
    %v1690 = vld [vmem:[#allocation8 + $0x1c8] sm:$0xff]
    %v1691 = vld [vmem:[#allocation8 + $0x1d0] sm:$0xff]
    %v1692 = vld [vmem:[#allocation8 + $0x1d8] sm:$0xff]
    %v1693 = vld [vmem:[#allocation8 + $0x1e0] sm:$0xff]
    %v1694 = vld [vmem:[#allocation8 + $0x1e8] sm:$0xff]
    %v1695 = vld [vmem:[#allocation8 + $0x1f0] sm:$0xff]
    %v1696 = vld [vmem:[#allocation8 + $0x1f8] sm:$0xff]
    %v1697 = vld [vmem:[#allocation8 + $0x200] sm:$0xff]
    %v1698 = vld [vmem:[#allocation8 + $0x208] sm:$0xff]
    %v1699 = vld [vmem:[#allocation8 + $0x210] sm:$0xff]
    %v1700 = vld [vmem:[#allocation8 + $0x218] sm:$0xff]
    %v1701 = vld [vmem:[#allocation8 + $0x220] sm:$0xff]
    %v1702 = vld [vmem:[#allocation8 + $0x228] sm:$0xff]
    %v1703 = vld [vmem:[#allocation8 + $0x230] sm:$0xff]
    %v1704 = vld [vmem:[#allocation8 + $0x238] sm:$0xff]
    %v1705 = vld [vmem:[#allocation8 + $0x240] sm:$0xff]
    %v1706 = vld [vmem:[#allocation8 + $0x248] sm:$0xff]
    %v1707 = vld [vmem:[#allocation8 + $0x250] sm:$0xff]
    %v1708 = vld [vmem:[#allocation8 + $0x258] sm:$0xff]
    %v1709 = vld [vmem:[#allocation8 + $0x260] sm:$0xff]
    %v1710 = vld [vmem:[#allocation8 + $0x268] sm:$0xff]
    %v1711 = vld [vmem:[#allocation8 + $0x270] sm:$0xff]
    %v1712 = vld [vmem:[#allocation8 + $0x278] sm:$0xff]
    %v1713 = vld [vmem:[#allocation8 + $0x280] sm:$0xff]
    %v1714 = vld [vmem:[#allocation8 + $0x288] sm:$0xff]
    %v1715 = vld [vmem:[#allocation8 + $0x290] sm:$0xff]
    %v1716 = vld [vmem:[#allocation8 + $0x298] sm:$0xff]
    %v1717 = vld [vmem:[#allocation8 + $0x2a0] sm:$0xff]
    %v1718 = vld [vmem:[#allocation8 + $0x2a8] sm:$0xff]
    %v1719 = vld [vmem:[#allocation8 + $0x2b0] sm:$0xff]
    %v1720 = vld [vmem:[#allocation8 + $0x2b8] sm:$0xff]
    %v1721 = vld [vmem:[#allocation8 + $0x2c0] sm:$0xff]
    %v1722 = vld [vmem:[#allocation8 + $0x2c8] sm:$0xff]
    %v1723 = vld [vmem:[#allocation8 + $0x2d0] sm:$0xff]
    %v1724 = vld [vmem:[#allocation8 + $0x2d8] sm:$0xff]
    %v1725 = vld [vmem:[#allocation8 + $0x2e0] sm:$0xff]
    %v1726 = vld [vmem:[#allocation8 + $0x2e8] sm:$0xff]
    %v1727 = vld [vmem:[#allocation8 + $0x2f0] sm:$0xff]
    %v1728 = vld [vmem:[#allocation8 + $0x2f8] sm:$0xff]
    %v1729 = vld [vmem:[#allocation8 + $0x300] sm:$0xff]
    %v1730 = vld [vmem:[#allocation8 + $0x308] sm:$0xff]
    %v1731 = vld [vmem:[#allocation8 + $0x310] sm:$0xff]
    %v1732 = vld [vmem:[#allocation8 + $0x318] sm:$0xff]
    %v1733 = vld [vmem:[#allocation8 + $0x320] sm:$0xff]
    %v1734 = vld [vmem:[#allocation8 + $0x328] sm:$0xff]
    %v1735 = vld [vmem:[#allocation8 + $0x330] sm:$0xff]
    %v1736 = vld [vmem:[#allocation8 + $0x338] sm:$0xff]
    %v1737 = vld [vmem:[#allocation8 + $0x340] sm:$0xff]
    %v1738 = vld [vmem:[#allocation8 + $0x348] sm:$0xff]
    %v1739 = vld [vmem:[#allocation8 + $0x350] sm:$0xff]
    %v1740 = vld [vmem:[#allocation8 + $0x358] sm:$0xff]
    %v1741 = vld [vmem:[#allocation8 + $0x360] sm:$0xff]
    %v1742 = vld [vmem:[#allocation8 + $0x368] sm:$0xff]
    %v1743 = vld [vmem:[#allocation8 + $0x370] sm:$0xff]
    %v1744 = vld [vmem:[#allocation8 + $0x378] sm:$0xff]
    %v1745 = vld [vmem:[%s4] sm:$0x3]
    %v1747 = vperm.slane %v1745, 0
    %v1748 = vperm.slane %v1745, 1
    %v1863 = vunpack.c.l.b16 %v1633
    %v1864 = vunpack.c.h.b16 %v1633
    %v1865 = vunpack.c.l.b16 %v1634
    %v1866 = vunpack.c.h.b16 %v1634
    %v1867 = vunpack.c.l.b16 %v1635
    %v1868 = vunpack.c.h.b16 %v1635
    %v1869 = vunpack.c.l.b16 %v1636
    %v1870 = vunpack.c.h.b16 %v1636
    %v1871 = vunpack.c.l.b16 %v1637
    %v1872 = vunpack.c.h.b16 %v1637
    %v1873 = vunpack.c.l.b16 %v1638
    %v1874 = vunpack.c.h.b16 %v1638
    %v1875 = vunpack.c.l.b16 %v1639
    %v1876 = vunpack.c.h.b16 %v1639
    %v1877 = vunpack.c.l.b16 %v1640
    %v1878 = vunpack.c.h.b16 %v1640
    %v1879 = vunpack.c.l.b16 %v1641
    %v1880 = vunpack.c.h.b16 %v1641
    %v1881 = vunpack.c.l.b16 %v1642
    %v1882 = vunpack.c.h.b16 %v1642
    %v1883 = vunpack.c.l.b16 %v1643
    %v1884 = vunpack.c.h.b16 %v1643
    %v1885 = vunpack.c.l.b16 %v1644
    %v1886 = vunpack.c.h.b16 %v1644
    %v1887 = vunpack.c.l.b16 %v1645
    %v1888 = vunpack.c.h.b16 %v1645
    %v1889 = vunpack.c.l.b16 %v1646
    %v1890 = vunpack.c.h.b16 %v1646
    %v1891 = vunpack.c.l.b16 %v1647
    %v1892 = vunpack.c.h.b16 %v1647
    %v1893 = vunpack.c.l.b16 %v1648
    %v1894 = vunpack.c.h.b16 %v1648
    %v1895 = vunpack.c.l.b16 %v1649
    %v1896 = vunpack.c.h.b16 %v1649
    %v1897 = vunpack.c.l.b16 %v1650
    %v1898 = vunpack.c.h.b16 %v1650
    %v1899 = vunpack.c.l.b16 %v1651
    %v1900 = vunpack.c.h.b16 %v1651
    %v1901 = vunpack.c.l.b16 %v1652
    %v1902 = vunpack.c.h.b16 %v1652
    %v1903 = vunpack.c.l.b16 %v1653
    %v1904 = vunpack.c.h.b16 %v1653
    %v1905 = vunpack.c.l.b16 %v1654
    %v1906 = vunpack.c.h.b16 %v1654
    %v1907 = vunpack.c.l.b16 %v1655
    %v1908 = vunpack.c.h.b16 %v1655
    %v1909 = vunpack.c.l.b16 %v1656
    %v1910 = vunpack.c.h.b16 %v1656
    %v1911 = vunpack.c.l.b16 %v1657
    %v1912 = vunpack.c.h.b16 %v1657
    %v1913 = vunpack.c.l.b16 %v1658
    %v1914 = vunpack.c.h.b16 %v1658
    %v1915 = vunpack.c.l.b16 %v1659
    %v1916 = vunpack.c.h.b16 %v1659
    %v1917 = vunpack.c.l.b16 %v1660
    %v1918 = vunpack.c.h.b16 %v1660
    %v1919 = vunpack.c.l.b16 %v1661
    %v1920 = vunpack.c.h.b16 %v1661
    %v1921 = vunpack.c.l.b16 %v1662
    %v1922 = vunpack.c.h.b16 %v1662
    %v1923 = vunpack.c.l.b16 %v1663
    %v1924 = vunpack.c.h.b16 %v1663
    %v1925 = vunpack.c.l.b16 %v1664
    %v1926 = vunpack.c.h.b16 %v1664
    %v1927 = vunpack.c.l.b16 %v1665
    %v1928 = vunpack.c.h.b16 %v1665
    %v1929 = vunpack.c.l.b16 %v1666
    %v1930 = vunpack.c.h.b16 %v1666
    %v1931 = vunpack.c.l.b16 %v1667
    %v1932 = vunpack.c.h.b16 %v1667
    %v1933 = vunpack.c.l.b16 %v1668
    %v1934 = vunpack.c.h.b16 %v1668
    %v1935 = vunpack.c.l.b16 %v1669
    %v1936 = vunpack.c.h.b16 %v1669
    %v1937 = vunpack.c.l.b16 %v1670
    %v1938 = vunpack.c.h.b16 %v1670
    %v1939 = vunpack.c.l.b16 %v1671
    %v1940 = vunpack.c.h.b16 %v1671
    %v1941 = vunpack.c.l.b16 %v1672
    %v1942 = vunpack.c.h.b16 %v1672
    %v1943 = vunpack.c.l.b16 %v1673
    %v1944 = vunpack.c.h.b16 %v1673
    %v1945 = vunpack.c.l.b16 %v1674
    %v1946 = vunpack.c.h.b16 %v1674
    %v1947 = vunpack.c.l.b16 %v1675
    %v1948 = vunpack.c.h.b16 %v1675
    %v1949 = vunpack.c.l.b16 %v1676
    %v1950 = vunpack.c.h.b16 %v1676
    %v1951 = vunpack.c.l.b16 %v1677
    %v1952 = vunpack.c.h.b16 %v1677
    %v1953 = vunpack.c.l.b16 %v1678
    %v1954 = vunpack.c.h.b16 %v1678
    %v1955 = vunpack.c.l.b16 %v1679
    %v1956 = vunpack.c.h.b16 %v1679
    %v1957 = vunpack.c.l.b16 %v1680
    %v1958 = vunpack.c.h.b16 %v1680
    %v1959 = vunpack.c.l.b16 %v1681
    %v1960 = vunpack.c.h.b16 %v1681
    %v1961 = vunpack.c.l.b16 %v1682
    %v1962 = vunpack.c.h.b16 %v1682
    %v1963 = vunpack.c.l.b16 %v1683
    %v1964 = vunpack.c.h.b16 %v1683
    %v1965 = vunpack.c.l.b16 %v1684
    %v1966 = vunpack.c.h.b16 %v1684
    %v1967 = vunpack.c.l.b16 %v1685
    %v1968 = vunpack.c.h.b16 %v1685
    %v1969 = vunpack.c.l.b16 %v1686
    %v1970 = vunpack.c.h.b16 %v1686
    %v1971 = vunpack.c.l.b16 %v1687
    %v1972 = vunpack.c.h.b16 %v1687
    %v1973 = vunpack.c.l.b16 %v1688
    %v1974 = vunpack.c.h.b16 %v1688
    %v1975 = vunpack.c.l.b16 %v1689
    %v1976 = vunpack.c.h.b16 %v1689
    %v1977 = vunpack.c.l.b16 %v1690
    %v1978 = vunpack.c.h.b16 %v1690
    %v1979 = vunpack.c.l.b16 %v1691
    %v1980 = vunpack.c.h.b16 %v1691
    %v1981 = vunpack.c.l.b16 %v1692
    %v1982 = vunpack.c.h.b16 %v1692
    %v1983 = vunpack.c.l.b16 %v1693
    %v1984 = vunpack.c.h.b16 %v1693
    %v1985 = vunpack.c.l.b16 %v1694
    %v1986 = vunpack.c.h.b16 %v1694
    %v1987 = vunpack.c.l.b16 %v1695
    %v1988 = vunpack.c.h.b16 %v1695
    %v1989 = vunpack.c.l.b16 %v1696
    %v1990 = vunpack.c.h.b16 %v1696
    %v1991 = vunpack.c.l.b16 %v1697
    %v1992 = vunpack.c.h.b16 %v1697
    %v1993 = vunpack.c.l.b16 %v1698
    %v1994 = vunpack.c.h.b16 %v1698
    %v1995 = vunpack.c.l.b16 %v1699
    %v1996 = vunpack.c.h.b16 %v1699
    %v1997 = vunpack.c.l.b16 %v1700
    %v1998 = vunpack.c.h.b16 %v1700
    %v1999 = vunpack.c.l.b16 %v1701
    %v2000 = vunpack.c.h.b16 %v1701
    %v2001 = vunpack.c.l.b16 %v1702
    %v2002 = vunpack.c.h.b16 %v1702
    %v2003 = vunpack.c.l.b16 %v1703
    %v2004 = vunpack.c.h.b16 %v1703
    %v2005 = vunpack.c.l.b16 %v1704
    %v2006 = vunpack.c.h.b16 %v1704
    %v2007 = vunpack.c.l.b16 %v1705
    %v2008 = vunpack.c.h.b16 %v1705
    %v2009 = vunpack.c.l.b16 %v1706
    %v2010 = vunpack.c.h.b16 %v1706
    %v2011 = vunpack.c.l.b16 %v1707
    %v2012 = vunpack.c.h.b16 %v1707
    %v2013 = vunpack.c.l.b16 %v1708
    %v2014 = vunpack.c.h.b16 %v1708
    %v2015 = vunpack.c.l.b16 %v1709
    %v2016 = vunpack.c.h.b16 %v1709
    %v2017 = vunpack.c.l.b16 %v1710
    %v2018 = vunpack.c.h.b16 %v1710
    %v2019 = vunpack.c.l.b16 %v1711
    %v2020 = vunpack.c.h.b16 %v1711
    %v2021 = vunpack.c.l.b16 %v1712
    %v2022 = vunpack.c.h.b16 %v1712
    %v2023 = vunpack.c.l.b16 %v1713
    %v2024 = vunpack.c.h.b16 %v1713
    %v2025 = vunpack.c.l.b16 %v1714
    %v2026 = vunpack.c.h.b16 %v1714
    %v2027 = vunpack.c.l.b16 %v1715
    %v2028 = vunpack.c.h.b16 %v1715
    %v2029 = vunpack.c.l.b16 %v1716
    %v2030 = vunpack.c.h.b16 %v1716
    %v2031 = vunpack.c.l.b16 %v1717
    %v2032 = vunpack.c.h.b16 %v1717
    %v2033 = vunpack.c.l.b16 %v1718
    %v2034 = vunpack.c.h.b16 %v1718
    %v2035 = vunpack.c.l.b16 %v1719
    %v2036 = vunpack.c.h.b16 %v1719
    %v2037 = vunpack.c.l.b16 %v1720
    %v2038 = vunpack.c.h.b16 %v1720
    %v2039 = vunpack.c.l.b16 %v1721
    %v2040 = vunpack.c.h.b16 %v1721
    %v2041 = vunpack.c.l.b16 %v1722
    %v2042 = vunpack.c.h.b16 %v1722
    %v2043 = vunpack.c.l.b16 %v1723
    %v2044 = vunpack.c.h.b16 %v1723
    %v2045 = vunpack.c.l.b16 %v1724
    %v2046 = vunpack.c.h.b16 %v1724
    %v2047 = vunpack.c.l.b16 %v1725
    %v2048 = vunpack.c.h.b16 %v1725
    %v2049 = vunpack.c.l.b16 %v1726
    %v2050 = vunpack.c.h.b16 %v1726
    %v2051 = vunpack.c.l.b16 %v1727
    %v2052 = vunpack.c.h.b16 %v1727
    %v2053 = vunpack.c.l.b16 %v1728
    %v2054 = vunpack.c.h.b16 %v1728
    %v2055 = vunpack.c.l.b16 %v1729
    %v2056 = vunpack.c.h.b16 %v1729
    %v2057 = vunpack.c.l.b16 %v1730
    %v2058 = vunpack.c.h.b16 %v1730
    %v2059 = vunpack.c.l.b16 %v1731
    %v2060 = vunpack.c.h.b16 %v1731
    %v2061 = vunpack.c.l.b16 %v1732
    %v2062 = vunpack.c.h.b16 %v1732
    %v2063 = vunpack.c.l.b16 %v1733
    %v2064 = vunpack.c.h.b16 %v1733
    %v2065 = vunpack.c.l.b16 %v1734
    %v2066 = vunpack.c.h.b16 %v1734
    %v2067 = vunpack.c.l.b16 %v1735
    %v2068 = vunpack.c.h.b16 %v1735
    %v2069 = vunpack.c.l.b16 %v1736
    %v2070 = vunpack.c.h.b16 %v1736
    %v2071 = vunpack.c.l.b16 %v1737
    %v2072 = vunpack.c.h.b16 %v1737
    %v2073 = vunpack.c.l.b16 %v1738
    %v2074 = vunpack.c.h.b16 %v1738
    %v2075 = vunpack.c.l.b16 %v1739
    %v2076 = vunpack.c.h.b16 %v1739
    %v2077 = vunpack.c.l.b16 %v1740
    %v2078 = vunpack.c.h.b16 %v1740
    %v2079 = vunpack.c.l.b16 %v1741
    %v2080 = vunpack.c.h.b16 %v1741
    %v2081 = vunpack.c.l.b16 %v1742
    %v2082 = vunpack.c.h.b16 %v1742
    %v2083 = vunpack.c.l.b16 %v1743
    %v2084 = vunpack.c.h.b16 %v1743
    %v2085 = vunpack.c.l.b16 %v1744
    %v2086 = vunpack.c.h.b16 %v1744
    %v2087 = vpack.c.b16 %v1865, %v1863
    %v2088 = vpack.c.b16 %v1866, %v1864
    %v2089 = vpack.c.b16 %v1869, %v1867
    %v2090 = vpack.c.b16 %v1870, %v1868
    %v2091 = vpack.c.b16 %v1873, %v1871
    %v2092 = vpack.c.b16 %v1874, %v1872
    %v2093 = vpack.c.b16 %v1877, %v1875
    %v2094 = vpack.c.b16 %v1878, %v1876
    %v2095 = vpack.c.b16 %v1881, %v1879
    %v2096 = vpack.c.b16 %v1882, %v1880
    %v2097 = vpack.c.b16 %v1885, %v1883
    %v2098 = vpack.c.b16 %v1886, %v1884
    %v2099 = vpack.c.b16 %v1889, %v1887
    %v2100 = vpack.c.b16 %v1890, %v1888
    %v2101 = vpack.c.b16 %v1893, %v1891
    %v2102 = vpack.c.b16 %v1894, %v1892
    %v2103 = vpack.c.b16 %v1897, %v1895
    %v2104 = vpack.c.b16 %v1898, %v1896
    %v2105 = vpack.c.b16 %v1901, %v1899
    %v2106 = vpack.c.b16 %v1902, %v1900
    %v2107 = vpack.c.b16 %v1905, %v1903
    %v2108 = vpack.c.b16 %v1906, %v1904
    %v2109 = vpack.c.b16 %v1909, %v1907
    %v2110 = vpack.c.b16 %v1910, %v1908
    %v2111 = vpack.c.b16 %v1913, %v1911
    %v2112 = vpack.c.b16 %v1914, %v1912
    %v2113 = vpack.c.b16 %v1917, %v1915
    %v2114 = vpack.c.b16 %v1918, %v1916
    %v2115 = vpack.c.b16 %v1921, %v1919
    %v2116 = vpack.c.b16 %v1922, %v1920
    %v2117 = vpack.c.b16 %v1925, %v1923
    %v2118 = vpack.c.b16 %v1926, %v1924
    %v2119 = vpack.c.b16 %v1929, %v1927
    %v2120 = vpack.c.b16 %v1930, %v1928
    %v2121 = vpack.c.b16 %v1933, %v1931
    %v2122 = vpack.c.b16 %v1934, %v1932
    %v2123 = vpack.c.b16 %v1937, %v1935
    %v2124 = vpack.c.b16 %v1938, %v1936
    %v2125 = vpack.c.b16 %v1941, %v1939
    %v2126 = vpack.c.b16 %v1942, %v1940
    %v2127 = vpack.c.b16 %v1945, %v1943
    %v2128 = vpack.c.b16 %v1946, %v1944
    %v2129 = vpack.c.b16 %v1949, %v1947
    %v2130 = vpack.c.b16 %v1950, %v1948
    %v2131 = vpack.c.b16 %v1953, %v1951
    %v2132 = vpack.c.b16 %v1954, %v1952
    %v2133 = vpack.c.b16 %v1957, %v1955
    %v2134 = vpack.c.b16 %v1958, %v1956
    %v2135 = vpack.c.b16 %v1961, %v1959
    %v2136 = vpack.c.b16 %v1962, %v1960
    %v2137 = vpack.c.b16 %v1965, %v1963
    %v2138 = vpack.c.b16 %v1966, %v1964
    %v2139 = vpack.c.b16 %v1969, %v1967
    %v2140 = vpack.c.b16 %v1970, %v1968
    %v2141 = vpack.c.b16 %v1973, %v1971
    %v2142 = vpack.c.b16 %v1974, %v1972
    %v2143 = vpack.c.b16 %v1977, %v1975
    %v2144 = vpack.c.b16 %v1978, %v1976
    %v2145 = vpack.c.b16 %v1981, %v1979
    %v2146 = vpack.c.b16 %v1982, %v1980
    %v2147 = vpack.c.b16 %v1985, %v1983
    %v2148 = vpack.c.b16 %v1986, %v1984
    %v2149 = vpack.c.b16 %v1989, %v1987
    %v2150 = vpack.c.b16 %v1990, %v1988
    %v2151 = vpack.c.b16 %v1993, %v1991
    %v2152 = vpack.c.b16 %v1994, %v1992
    %v2153 = vpack.c.b16 %v1997, %v1995
    %v2154 = vpack.c.b16 %v1998, %v1996
    %v2155 = vpack.c.b16 %v2001, %v1999
    %v2156 = vpack.c.b16 %v2002, %v2000
    %v2157 = vpack.c.b16 %v2005, %v2003
    %v2158 = vpack.c.b16 %v2006, %v2004
    %v2159 = vpack.c.b16 %v2009, %v2007
    %v2160 = vpack.c.b16 %v2010, %v2008
    %v2161 = vpack.c.b16 %v2013, %v2011
    %v2162 = vpack.c.b16 %v2014, %v2012
    %v2163 = vpack.c.b16 %v2017, %v2015
    %v2164 = vpack.c.b16 %v2018, %v2016
    %v2165 = vpack.c.b16 %v2021, %v2019
    %v2166 = vpack.c.b16 %v2022, %v2020
    %v2167 = vpack.c.b16 %v2025, %v2023
    %v2168 = vpack.c.b16 %v2026, %v2024
    %v2169 = vpack.c.b16 %v2029, %v2027
    %v2170 = vpack.c.b16 %v2030, %v2028
    %v2171 = vpack.c.b16 %v2033, %v2031
    %v2172 = vpack.c.b16 %v2034, %v2032
    %v2173 = vpack.c.b16 %v2037, %v2035
    %v2174 = vpack.c.b16 %v2038, %v2036
    %v2175 = vpack.c.b16 %v2041, %v2039
    %v2176 = vpack.c.b16 %v2042, %v2040
    %v2177 = vpack.c.b16 %v2045, %v2043
    %v2178 = vpack.c.b16 %v2046, %v2044
    %v2179 = vpack.c.b16 %v2049, %v2047
    %v2180 = vpack.c.b16 %v2050, %v2048
    %v2181 = vpack.c.b16 %v2053, %v2051
    %v2182 = vpack.c.b16 %v2054, %v2052
    %v2183 = vpack.c.b16 %v2057, %v2055
    %v2184 = vpack.c.b16 %v2058, %v2056
    %v2185 = vpack.c.b16 %v2061, %v2059
    %v2186 = vpack.c.b16 %v2062, %v2060
    %v2187 = vpack.c.b16 %v2065, %v2063
    %v2188 = vpack.c.b16 %v2066, %v2064
    %v2189 = vpack.c.b16 %v2069, %v2067
    %v2190 = vpack.c.b16 %v2070, %v2068
    %v2191 = vpack.c.b16 %v2073, %v2071
    %v2192 = vpack.c.b16 %v2074, %v2072
    %v2193 = vpack.c.b16 %v2077, %v2075
    %v2194 = vpack.c.b16 %v2078, %v2076
    %v2195 = vpack.c.b16 %v2081, %v2079
    %v2196 = vpack.c.b16 %v2082, %v2080
    %v2197 = vpack.c.b16 %v2085, %v2083
    %v2198 = vpack.c.b16 %v2086, %v2084
    %2311 = vmatpush.bf16.msra.mxu0 %v2101
    %2312 = vmatpush.bf16.msra.mxu0 %v2099
    %2313 = vmatpush.bf16.msra.mxu0 %v2097
    %2314 = vmatpush.bf16.msra.mxu0 %v2095
    %2315 = vmatpush.bf16.msra.mxu0 %v2093
    %2316 = vmatpush.bf16.msra.mxu0 %v2091
    %2317 = vmatpush.bf16.msra.mxu0 %v2089
    %2318 = vmatpush.bf16.msra.mxu0 %v2087
    %2319 = vmatmul.bf16.gmra.mxu0 %v1626
    %v2320 = vpop.f32.mrf.mxu0
    %v2321 = vadd.f32 %v1747, %v2320
    %v2322 = vpop.f32.mrf.mxu0
    %v2323 = vadd.f32 %v1747, %v2322
    %2324 = vdwg.mxu0
    %2325 = vmatpush.bf16.msra.mxu0 %v2117
    %2326 = vmatpush.bf16.msra.mxu0 %v2115
    %2327 = vmatpush.bf16.msra.mxu0 %v2113
    %2328 = vmatpush.bf16.msra.mxu0 %v2111
    %2329 = vmatpush.bf16.msra.mxu0 %v2109
    %2330 = vmatpush.bf16.msra.mxu0 %v2107
    %2331 = vmatpush.bf16.msra.mxu0 %v2105
    %2332 = vmatpush.bf16.msra.mxu0 %v2103
    %2333 = vmatmul.bf16.gmra.mxu0 %v1627
    %v2334 = vpop.f32.mrf.mxu0
    %v2335 = vadd.f32 %v2321, %v2334
    %v2336 = vpop.f32.mrf.mxu0
    %v2337 = vadd.f32 %v2323, %v2336
    %2338 = vdwg.mxu0
    %2339 = vmatpush.bf16.msra.mxu0 %v2133
    %2340 = vmatpush.bf16.msra.mxu0 %v2131
    %2341 = vmatpush.bf16.msra.mxu0 %v2129
    %2342 = vmatpush.bf16.msra.mxu0 %v2127
    %2343 = vmatpush.bf16.msra.mxu0 %v2125
    %2344 = vmatpush.bf16.msra.mxu0 %v2123
    %2345 = vmatpush.bf16.msra.mxu0 %v2121
    %2346 = vmatpush.bf16.msra.mxu0 %v2119
    %2347 = vmatmul.bf16.gmra.mxu0 %v1628
    %v2348 = vpop.f32.mrf.mxu0
    %v2349 = vadd.f32 %v2335, %v2348
    %v2350 = vpop.f32.mrf.mxu0
    %v2351 = vadd.f32 %v2337, %v2350
    %2352 = vdwg.mxu0
    %2353 = vmatpush.bf16.msra.mxu0 %v2149
    %2354 = vmatpush.bf16.msra.mxu0 %v2147
    %2355 = vmatpush.bf16.msra.mxu0 %v2145
    %2356 = vmatpush.bf16.msra.mxu0 %v2143
    %2357 = vmatpush.bf16.msra.mxu0 %v2141
    %2358 = vmatpush.bf16.msra.mxu0 %v2139
    %2359 = vmatpush.bf16.msra.mxu0 %v2137
    %2360 = vmatpush.bf16.msra.mxu0 %v2135
    %2361 = vmatmul.bf16.gmra.mxu0 %v1629
    %v2362 = vpop.f32.mrf.mxu0
    %v2363 = vadd.f32 %v2349, %v2362
    %v2364 = vpop.f32.mrf.mxu0
    %v2365 = vadd.f32 %v2351, %v2364
    %2366 = vdwg.mxu0
    %2367 = vmatpush.bf16.msra.mxu0 %v2165
    %2368 = vmatpush.bf16.msra.mxu0 %v2163
    %2369 = vmatpush.bf16.msra.mxu0 %v2161
    %2370 = vmatpush.bf16.msra.mxu0 %v2159
    %2371 = vmatpush.bf16.msra.mxu0 %v2157
    %2372 = vmatpush.bf16.msra.mxu0 %v2155
    %2373 = vmatpush.bf16.msra.mxu0 %v2153
    %2374 = vmatpush.bf16.msra.mxu0 %v2151
    %2375 = vmatmul.bf16.gmra.mxu0 %v1630
    %v2376 = vpop.f32.mrf.mxu0
    %v2377 = vadd.f32 %v2363, %v2376
    %v2378 = vpop.f32.mrf.mxu0
    %v2379 = vadd.f32 %v2365, %v2378
    %2380 = vdwg.mxu0
    %2381 = vmatpush.bf16.msra.mxu0 %v2181
    %2382 = vmatpush.bf16.msra.mxu0 %v2179
    %2383 = vmatpush.bf16.msra.mxu0 %v2177
    %2384 = vmatpush.bf16.msra.mxu0 %v2175
    %2385 = vmatpush.bf16.msra.mxu0 %v2173
    %2386 = vmatpush.bf16.msra.mxu0 %v2171
    %2387 = vmatpush.bf16.msra.mxu0 %v2169
    %2388 = vmatpush.bf16.msra.mxu0 %v2167
    %2389 = vmatmul.bf16.gmra.mxu0 %v1631
    %v2390 = vpop.f32.mrf.mxu0
    %v2391 = vadd.f32 %v2377, %v2390
    %v2392 = vpop.f32.mrf.mxu0
    %v2393 = vadd.f32 %v2379, %v2392
    %2394 = vdwg.mxu0
    %2395 = vmatpush.bf16.msra.mxu0 %v2197
    %2396 = vmatpush.bf16.msra.mxu0 %v2195
    %2397 = vmatpush.bf16.msra.mxu0 %v2193
    %2398 = vmatpush.bf16.msra.mxu0 %v2191
    %2399 = vmatpush.bf16.msra.mxu0 %v2189
    %2400 = vmatpush.bf16.msra.mxu0 %v2187
    %2401 = vmatpush.bf16.msra.mxu0 %v2185
    %2402 = vmatpush.bf16.msra.mxu0 %v2183
    %2403 = vmatmul.bf16.gmra.mxu0 %v1632
    %v2404 = vpop.f32.mrf.mxu0
    %v2405 = vadd.f32 %v2391, %v2404
    %v2406 = vpop.f32.mrf.mxu0
    %v2407 = vadd.f32 %v2393, %v2406
    %2408 = vdwg.mxu0
    %2409 = vmatpush.bf16.msra.mxu0 %v2102
    %2410 = vmatpush.bf16.msra.mxu0 %v2100
    %2411 = vmatpush.bf16.msra.mxu0 %v2098
    %2412 = vmatpush.bf16.msra.mxu0 %v2096
    %2413 = vmatpush.bf16.msra.mxu0 %v2094
    %2414 = vmatpush.bf16.msra.mxu0 %v2092
    %2415 = vmatpush.bf16.msra.mxu0 %v2090
    %2416 = vmatpush.bf16.msra.mxu0 %v2088
    %2417 = vmatmul.bf16.gmra.mxu0 %v1626
    %v2418 = vpop.f32.mrf.mxu0
    %v2419 = vadd.f32 %v1748, %v2418
    %v2420 = vpop.f32.mrf.mxu0
    %v2421 = vadd.f32 %v1748, %v2420
    %2422 = vdwg.mxu0
    %2423 = vmatpush.bf16.msra.mxu0 %v2118
    %2424 = vmatpush.bf16.msra.mxu0 %v2116
    %2425 = vmatpush.bf16.msra.mxu0 %v2114
    %2426 = vmatpush.bf16.msra.mxu0 %v2112
    %2427 = vmatpush.bf16.msra.mxu0 %v2110
    %2428 = vmatpush.bf16.msra.mxu0 %v2108
    %2429 = vmatpush.bf16.msra.mxu0 %v2106
    %2430 = vmatpush.bf16.msra.mxu0 %v2104
    %2431 = vmatmul.bf16.gmra.mxu0 %v1627
    %v2432 = vpop.f32.mrf.mxu0
    %v2433 = vadd.f32 %v2419, %v2432
    %v2434 = vpop.f32.mrf.mxu0
    %v2435 = vadd.f32 %v2421, %v2434
    %2436 = vdwg.mxu0
    %2437 = vmatpush.bf16.msra.mxu0 %v2134
    %2438 = vmatpush.bf16.msra.mxu0 %v2132
    %2439 = vmatpush.bf16.msra.mxu0 %v2130
    %2440 = vmatpush.bf16.msra.mxu0 %v2128
    %2441 = vmatpush.bf16.msra.mxu0 %v2126
    %2442 = vmatpush.bf16.msra.mxu0 %v2124
    %2443 = vmatpush.bf16.msra.mxu0 %v2122
    %2444 = vmatpush.bf16.msra.mxu0 %v2120
    %2445 = vmatmul.bf16.gmra.mxu0 %v1628
    %v2446 = vpop.f32.mrf.mxu0
    %v2447 = vadd.f32 %v2433, %v2446
    %v2448 = vpop.f32.mrf.mxu0
    %v2449 = vadd.f32 %v2435, %v2448
    %2450 = vdwg.mxu0
    %2451 = vmatpush.bf16.msra.mxu0 %v2150
    %2452 = vmatpush.bf16.msra.mxu0 %v2148
    %2453 = vmatpush.bf16.msra.mxu0 %v2146
    %2454 = vmatpush.bf16.msra.mxu0 %v2144
    %2455 = vmatpush.bf16.msra.mxu0 %v2142
    %2456 = vmatpush.bf16.msra.mxu0 %v2140
    %2457 = vmatpush.bf16.msra.mxu0 %v2138
    %2458 = vmatpush.bf16.msra.mxu0 %v2136
    %2459 = vmatmul.bf16.gmra.mxu0 %v1629
    %v2460 = vpop.f32.mrf.mxu0
    %v2461 = vadd.f32 %v2447, %v2460
    %v2462 = vpop.f32.mrf.mxu0
    %v2463 = vadd.f32 %v2449, %v2462
    %2464 = vdwg.mxu0
    %2465 = vmatpush.bf16.msra.mxu0 %v2166
    %2466 = vmatpush.bf16.msra.mxu0 %v2164
    %2467 = vmatpush.bf16.msra.mxu0 %v2162
    %2468 = vmatpush.bf16.msra.mxu0 %v2160
    %2469 = vmatpush.bf16.msra.mxu0 %v2158
    %2470 = vmatpush.bf16.msra.mxu0 %v2156
    %2471 = vmatpush.bf16.msra.mxu0 %v2154
    %2472 = vmatpush.bf16.msra.mxu0 %v2152
    %2473 = vmatmul.bf16.gmra.mxu0 %v1630
    %v2474 = vpop.f32.mrf.mxu0
    %v2475 = vadd.f32 %v2461, %v2474
    %v2476 = vpop.f32.mrf.mxu0
    %v2477 = vadd.f32 %v2463, %v2476
    %2478 = vdwg.mxu0
    %2479 = vmatpush.bf16.msra.mxu0 %v2182
    %2480 = vmatpush.bf16.msra.mxu0 %v2180
    %2481 = vmatpush.bf16.msra.mxu0 %v2178
    %2482 = vmatpush.bf16.msra.mxu0 %v2176
    %2483 = vmatpush.bf16.msra.mxu0 %v2174
    %2484 = vmatpush.bf16.msra.mxu0 %v2172
    %2485 = vmatpush.bf16.msra.mxu0 %v2170
    %2486 = vmatpush.bf16.msra.mxu0 %v2168
    %2487 = vmatmul.bf16.gmra.mxu0 %v1631
    %v2488 = vpop.f32.mrf.mxu0
    %v2489 = vadd.f32 %v2475, %v2488
    %v2490 = vpop.f32.mrf.mxu0
    %v2491 = vadd.f32 %v2477, %v2490
    %2492 = vdwg.mxu0
    %2493 = vmatpush.bf16.msra.mxu0 %v2198
    %2494 = vmatpush.bf16.msra.mxu0 %v2196
    %2495 = vmatpush.bf16.msra.mxu0 %v2194
    %2496 = vmatpush.bf16.msra.mxu0 %v2192
    %2497 = vmatpush.bf16.msra.mxu0 %v2190
    %2498 = vmatpush.bf16.msra.mxu0 %v2188
    %2499 = vmatpush.bf16.msra.mxu0 %v2186
    %2500 = vmatpush.bf16.msra.mxu0 %v2184
    %2501 = vmatmul.bf16.gmra.mxu0 %v1632
    %v2502 = vpop.f32.mrf.mxu0
    %v2503 = vadd.f32 %v2489, %v2502
    %v2504 = vpop.f32.mrf.mxu0
    %v2505 = vadd.f32 %v2491, %v2504
    %2506 = vdwg.mxu0
    %2507 = vst [vmem:[#allocation10] sm:$0xff] %v2405
    %2508 = vst [vmem:[#allocation10 + $0x8] sm:$0xff] %v2503
    %2509 = vst [vmem:[#allocation10 + $0x10] sm:$0xff] %v2407
    %2510 = vst [vmem:[#allocation10 + $0x18] sm:$0xff] %v2505
    // Predicated region
    $region38: #{tpu_custom_call.1} parent=1 // pred_check
      _
    $region39: #{tpu_custom_call.1} parent=1 // pred_check_branch
      %2512 = sbr.rel (0) target = $region41
    $region40: #{tpu_custom_call.1} parent=1 // pred_region
      %2514 = vsyncadd [#allocation4], 0
      %s2515 = sshll.u32 [#allocation10], 4
      %s2516 = int_to_ptr.vmem [resolvable:$true] %s2515
      %s2517 = sshll.u32 %s5, 4
      %s2518 = int_to_ptr.hbm [resolvable:$true] %s2517
      %2523 = dma.vmem_to_hbm [thread:$0]  %s2516, 512, %s2518, [#allocation4], 256, 256, 16
    $region41: #{tpu_custom_call.1} parent=1 // pred_fallthru
      _
    // Predicated region
    $region42: #{tpu_custom_call.1} parent=1 // pred_check
      _
    $region43: #{tpu_custom_call.1} parent=1 // pred_check_branch
      %2525 = sbr.rel (0) target = $region45
    $region44: #{tpu_custom_call.1} parent=1 // pred_region
      %2527 = dma.done [#allocation4], 512
    $region45: #{tpu_custom_call.1} parent=1 // pred_fallthru
      _
    %2528 = vsyncpa [#allocation3], 1
    %2529 = vsyncpa [#allocation6], 1
    %2530 = vsyncpa [#allocation9], 1
    %2531 = vsyncpa [#allocation4], 1

</llo_original>
